<compile_context>
chip_gen: v5e
topology: v5e:2x2
jax: 0.10.0
libtpu: 0.0.40
codegen_flags: <defaults>
</compile_context>

<pallas_src>
import functools

import jax
import jax.numpy as jnp
from jax.experimental import pallas as pl
from jax.experimental.pallas import tpu as pltpu

_LANE = 128      # last block dim must be a multiple of 128 (lane width)
_SUBLANE = 16    # sublane granularity covering bf16 (16) and f32 (8) tiles


def _round_up(n: int, m: int) -> int:
    return ((n + m - 1) // m) * m


def _pad2d(a, rows, cols):
    return jnp.pad(a, ((0, rows - a.shape[0]), (0, cols - a.shape[1])))


# ---------------------------------------------------------------------------
# fused CVAE forward kernel
# ---------------------------------------------------------------------------
def _make_cvae_kernel(n_enc_hidden: int, n_dec_hidden: int, latent_pad: int):
    """Builds the fused kernel for a fixed layer count / latent padding."""
    f32 = jnp.float32
    bf16 = jnp.bfloat16

    def kernel(x_ref, c_ref, eps_ref, *refs):
        n_w = len(refs) - 4
        w_it = iter(refs[:n_w])
        xhat_ref, mu_ref, sigma_ref, z_ref = refs[n_w:]

        def nxt():
            return next(w_it)

        x = x_ref[...]            # (TB, DIN_PAD) bf16
        c = c_ref[...]            # (TB, 128)     bf16  [c1, c2, 0, ...]

        # ------------------------------ encoder ------------------------------
        # conditional input layer: concat(x, c) @ W  ==  x @ Wx + c @ Wc
        w1x, w1c, b1 = nxt(), nxt(), nxt()
        h = jnp.dot(x, w1x[...], preferred_element_type=f32)
        h = h + jnp.dot(c, w1c[...], preferred_element_type=f32)
        h = jnp.maximum(h + b1[...], 0.0)
        for _ in range(n_enc_hidden):
            wi, bi = nxt(), nxt()
            h = jnp.dot(h.astype(bf16), wi[...], preferred_element_type=f32)
            h = jnp.maximum(h + bi[...], 0.0)

        # fused (mu | logvar) head: one lane-dense (H, 2*latent_pad) matmul
        wh, bh = nxt(), nxt()
        head = jnp.dot(h.astype(bf16), wh[...], preferred_element_type=f32)
        head = head + bh[...]
        mu = head[:, :latent_pad]
        sigma = 1e-6 + jnp.exp(0.5 * head[:, latent_pad:])   # f32 exp

        # -------------------------- reparameterization -----------------------
        z = mu + sigma * eps_ref[...]

        mu_ref[...] = mu
        sigma_ref[...] = sigma
        z_ref[...] = z

        # ------------------------------ decoder ------------------------------
        wz, wc, bd = nxt(), nxt(), nxt()
        h = jnp.dot(z.astype(bf16), wz[...], preferred_element_type=f32)
        h = h + jnp.dot(c, wc[...], preferred_element_type=f32)
        h = jnp.maximum(h + bd[...], 0.0)
        for _ in range(n_dec_hidden):
            wi, bi = nxt(), nxt()
            h = jnp.dot(h.astype(bf16), wi[...], preferred_element_type=f32)
            h = jnp.maximum(h + bi[...], 0.0)

        wo, bo = nxt(), nxt()
        logits = jnp.dot(h.astype(bf16), wo[...], preferred_element_type=f32)
        logits = logits + bo[...]
        xhat_ref[...] = (1.0 / (1.0 + jnp.exp(-logits))).astype(xhat_ref.dtype)

    return kernel


# ---------------------------------------------------------------------------
# parameter packing: torch-layout (out,in)/(out,) -> lane-padded kernel layout
# ---------------------------------------------------------------------------
def _pack_params(params, input_dim, hidden_dims, latent_dim):
    bf16, f32 = jnp.bfloat16, jnp.float32
    din = _round_up(input_dim, _LANE)
    lp = _round_up(latent_dim, _LANE)
    hp = [_round_up(h, _LANE) for h in hidden_dims]
    rev = list(hidden_dims[::-1])
    hdp = hp[::-1]

    def t(w):  # torch (out, in) -> (in, out), f32
        return jnp.asarray(w, f32).T

    def bias(b, n):
        return _pad2d(jnp.asarray(b, f32)[None, :], 1, n)

    flat = []

    # encoder input layer, split into x-part and condition-part
    w, b = params["enc"][0]
    wt = t(w)                                         # (input_dim + 2, h0)
    flat += [_pad2d(wt[:input_dim], din, hp[0]).astype(bf16),
             _pad2d(wt[input_dim:], _LANE, hp[0]).astype(bf16),
             bias(b, hp[0])]
    # encoder hidden layers
    for i in range(1, len(hidden_dims)):
        w, b = params["enc"][i]
        flat += [_pad2d(t(w), hp[i - 1], hp[i]).astype(bf16), bias(b, hp[i])]
    # encoder head: mu in lanes [0, lp), logvar in lanes [lp, 2*lp)
    w, b = params["enc"][-1]
    wt = t(w)                                         # (h_last, 2*latent)
    b = jnp.asarray(b, f32)
    wh = jnp.zeros((hp[-1], 2 * lp), f32)
    wh = wh.at[:hidden_dims[-1], :latent_dim].set(wt[:, :latent_dim])
    wh = wh.at[:hidden_dims[-1], lp:lp + latent_dim].set(wt[:, latent_dim:])
    bh = jnp.zeros((1, 2 * lp), f32)
    bh = bh.at[0, :latent_dim].set(b[:latent_dim])
    bh = bh.at[0, lp:lp + latent_dim].set(b[latent_dim:])
    flat += [wh.astype(bf16), bh]

    # decoder input layer, split into z-part and condition-part
    w, b = params["dec"][0]
    wt = t(w)                                         # (latent + 2, hd0)
    flat += [_pad2d(wt[:latent_dim], lp, hdp[0]).astype(bf16),
             _pad2d(wt[latent_dim:], _LANE, hdp[0]).astype(bf16),
             bias(b, hdp[0])]
    # decoder hidden layers
    for i in range(1, len(rev)):
        w, b = params["dec"][i]
        flat += [_pad2d(t(w), hdp[i - 1], hdp[i]).astype(bf16), bias(b, hdp[i])]
    # decoder readout (sigmoid applied in kernel)
    w, b = params["dec"][-1]
    flat += [_pad2d(t(w), hdp[-1], din).astype(bf16), bias(b, din)]
    return flat


# ---------------------------------------------------------------------------
# wrapper
# ---------------------------------------------------------------------------
def cvae_mlp_forward(params, x, c1, c2, rng_key, *,
                     input_dim=784, hidden_dims=(256, 128), latent_dim=16,
                     batch_tile=None):
    """Forward of CVAE_MLP (enc_condition=1, dec_condition=1).

    Returns (x_hat, mu, sigma, z), matching the PyTorch module."""
    hidden_dims = tuple(hidden_dims)
    x = jnp.asarray(x, jnp.float32).reshape(-1, input_dim)   # X.view(-1, 28*28)
    c1 = jnp.asarray(c1, jnp.float32).reshape(-1)
    c2 = jnp.asarray(c2, jnp.float32).reshape(-1)
    b = x.shape[0]

    din = _round_up(input_dim, _LANE)
    lp = _round_up(latent_dim, _LANE)
    tb = batch_tile or max(_SUBLANE, min(256, _round_up(b, _SUBLANE)))
    b_pad = _round_up(b, tb)

    # lane/sublane-padded inputs (bf16 halves HBM traffic for x)
    x_pad = jnp.zeros((b_pad, din), jnp.bfloat16)
    x_pad = x_pad.at[:b, :input_dim].set(x.astype(jnp.bfloat16))
    c_pad = jnp.zeros((b_pad, _LANE), jnp.bfloat16)
    c_pad = c_pad.at[:b, 0].set(c1.astype(jnp.bfloat16))
    c_pad = c_pad.at[:b, 1].set(c2.astype(jnp.bfloat16))
    # eps ~ N(0,1): host-side for determinism; in-kernel pltpu.prng_seed +
    # prng_random_bits would remove this (small) input stream.
    eps = jax.random.normal(rng_key, (b_pad, lp), jnp.float32)

    flat_w = _pack_params(params, input_dim, hidden_dims, latent_dim)

    def row_spec(width):
        return pl.BlockSpec((tb, width), lambda i: (i, 0))

    in_specs = ([row_spec(din), row_spec(_LANE), row_spec(lp)] +
                [pl.BlockSpec(w.shape, lambda i: (0, 0)) for w in flat_w])
    out_specs = (row_spec(din), row_spec(lp), row_spec(lp), row_spec(lp))
    out_shape = (jax.ShapeDtypeStruct((b_pad, din), jnp.float32),
                 jax.ShapeDtypeStruct((b_pad, lp), jnp.float32),
                 jax.ShapeDtypeStruct((b_pad, lp), jnp.float32),
                 jax.ShapeDtypeStruct((b_pad, lp), jnp.float32))

    kernel = _make_cvae_kernel(len(hidden_dims) - 1, len(hidden_dims) - 1, lp)
    xhat_p, mu_p, sigma_p, z_p = pl.pallas_call(
        kernel,
        grid=(b_pad // tb,),
        in_specs=in_specs,
        out_specs=out_specs,
        out_shape=out_shape,
        compiler_params=pltpu.CompilerParams(
            dimension_semantics=("parallel",),    # batch tiles are independent
            vmem_limit_bytes=64 * 1024 * 1024,    # explicit budget, fits v7x
        ),
    )(x_pad, c_pad, eps, *flat_w)

    return (xhat_p[:b, :input_dim], mu_p[:b, :latent_dim],
            sigma_p[:b, :latent_dim], z_p[:b, :latent_dim])


# ---------------------------------------------------------------------------
# parameter init (PyTorch nn.Linear layout and default-style init)
# ---------------------------------------------------------------------------
def init_cvae_params(key, input_dim=784, hidden_dims=(256, 128), latent_dim=16):
    hidden_dims = list(hidden_dims)

    def linear(k, fan_in, fan_out):
        kw, kb = jax.random.split(k)
        bound = 1.0 / (fan_in ** 0.5)
        w = jax.random.uniform(kw, (fan_out, fan_in), jnp.float32, -bound, bound)
        b = jax.random.uniform(kb, (fan_out,), jnp.float32, -bound, bound)
        return w, b

    enc_dims = [input_dim + 2] + hidden_dims + [2 * latent_dim]
    dec_dims = [latent_dim + 2] + hidden_dims[::-1] + [input_dim]
    n_enc, n_dec = len(enc_dims) - 1, len(dec_dims) - 1
    keys = jax.random.split(key, n_enc + n_dec)
    enc = [linear(keys[i], enc_dims[i], enc_dims[i + 1]) for i in range(n_enc)]
    dec = [linear(keys[n_enc + i], dec_dims[i], dec_dims[i + 1])
           for i in range(n_dec)]
    return {"enc": enc, "dec": dec}


# ---------------------------------------------------------------------------
# pure-JAX f32 reference (for the deterministic parts of the forward)
# ---------------------------------------------------------------------------
def _ref_encoder(params, x, c1, c2, latent_dim):
    h = jnp.concatenate([x, c1[:, None], c2[:, None]], axis=-1)
    for w, b in params["enc"][:-1]:
        h = jax.nn.relu(h @ w.T + b)
    w, b = params["enc"][-1]
    out = h @ w.T + b
    return out[:, :latent_dim], 1e-6 + jnp.exp(0.5 * out[:, latent_dim:])


def _ref_decoder(params, z, c1, c2):
    h = jnp.concatenate([z, c1[:, None], c2[:, None]], axis=-1)
    for w, b in params["dec"][:-1]:
        h = jax.nn.relu(h @ w.T + b)
    w, b = params["dec"][-1]
    return jax.nn.sigmoid(h @ w.T + b)


if __name__ == "__main__":
    INPUT_DIM, HIDDEN_DIMS, LATENT_DIM = 28 * 28, (256, 128), 16
    BATCH = 8

    root = jax.random.PRNGKey(0)
    k_params, k_x, k_c1, k_c2, k_eps = jax.random.split(root, 5)
    params = init_cvae_params(k_params, INPUT_DIM, HIDDEN_DIMS, LATENT_DIM)
    x = jax.random.uniform(k_x, (BATCH, 1, 28, 28), jnp.float32)   # MNIST-like
    c1 = jax.random.uniform(k_c1, (BATCH,), jnp.float32)
    c2 = jax.random.uniform(k_c2, (BATCH,), jnp.float32)

    fwd = jax.jit(functools.partial(
        cvae_mlp_forward, input_dim=INPUT_DIM,
        hidden_dims=HIDDEN_DIMS, latent_dim=LATENT_DIM))
    x_hat, mu, sigma, z = fwd(params, x, c1, c2, k_eps)
    jax.block_until_ready((x_hat, mu, sigma, z))

    assert x_hat.shape == (BATCH, INPUT_DIM)
    assert mu.shape == (BATCH, LATENT_DIM)
    assert sigma.shape == (BATCH, LATENT_DIM)
    assert z.shape == (BATCH, LATENT_DIM)

    # deterministic parts vs pure-JAX f32 reference (bf16 MXU => loose tol)
    x2d = x.reshape(BATCH, INPUT_DIM)
    mu_r, sigma_r = _ref_encoder(params, x2d, c1, c2, LATENT_DIM)
    xhat_r = _ref_decoder(params, z, c1, c2)     # decode the same z as kernel
    assert float(jnp.max(jnp.abs(mu - mu_r))) < 5e-2
    assert float(jnp.max(jnp.abs(sigma - sigma_r))) < 5e-2
    assert float(jnp.max(jnp.abs(x_hat - xhat_r))) < 5e-2
    assert bool(jnp.all(jnp.isfinite(z)))

    print("KERNEL_OK")
</pallas_src>

<mosaic_0001>
module attributes {stable_mosaic.version = 11 : i64} {
  func.func @kernel(%arg0: i32, %arg1: memref<16x896xbf16, #tpu.memory_space<vmem>>, %arg2: memref<16x128xbf16, #tpu.memory_space<vmem>>, %arg3: memref<16x128xf32, #tpu.memory_space<vmem>>, %arg4: memref<896x256xbf16, #tpu.memory_space<vmem>>, %arg5: memref<128x256xbf16, #tpu.memory_space<vmem>>, %arg6: memref<1x256xf32, #tpu.memory_space<vmem>>, %arg7: memref<256x128xbf16, #tpu.memory_space<vmem>>, %arg8: memref<1x128xf32, #tpu.memory_space<vmem>>, %arg9: memref<128x256xbf16, #tpu.memory_space<vmem>>, %arg10: memref<1x256xf32, #tpu.memory_space<vmem>>, %arg11: memref<128x128xbf16, #tpu.memory_space<vmem>>, %arg12: memref<128x128xbf16, #tpu.memory_space<vmem>>, %arg13: memref<1x128xf32, #tpu.memory_space<vmem>>, %arg14: memref<128x256xbf16, #tpu.memory_space<vmem>>, %arg15: memref<1x256xf32, #tpu.memory_space<vmem>>, %arg16: memref<256x896xbf16, #tpu.memory_space<vmem>>, %arg17: memref<1x896xf32, #tpu.memory_space<vmem>>, %arg18: memref<16x896xf32, #tpu.memory_space<vmem>>, %arg19: memref<16x128xf32, #tpu.memory_space<vmem>>, %arg20: memref<16x128xf32, #tpu.memory_space<vmem>>, %arg21: memref<16x128xf32, #tpu.memory_space<vmem>>) attributes {dimension_semantics = [#tpu.dimension_semantics<parallel>], iteration_bounds = array<i64: 1>, scalar_prefetch = 0 : i64, scratch_operands = 0 : i64, tpu.core_type = #tpu.core_type<tc>, window_params = [{transform_indices = @transform_0, window_bounds = array<i64: 16, 896>}, {transform_indices = @transform_1, window_bounds = array<i64: 16, 128>}, {transform_indices = @transform_2, window_bounds = array<i64: 16, 128>}, {pipeline_mode = #tpu.pipeline_mode<synchronous>, transform_indices = @transform_3, window_bounds = array<i64: 896, 256>}, {pipeline_mode = #tpu.pipeline_mode<synchronous>, transform_indices = @transform_4, window_bounds = array<i64: 128, 256>}, {pipeline_mode = #tpu.pipeline_mode<synchronous>, transform_indices = @transform_5, window_bounds = array<i64: 1, 256>}, {pipeline_mode = #tpu.pipeline_mode<synchronous>, transform_indices = @transform_6, window_bounds = array<i64: 256, 128>}, {pipeline_mode = #tpu.pipeline_mode<synchronous>, transform_indices = @transform_7, window_bounds = array<i64: 1, 128>}, {pipeline_mode = #tpu.pipeline_mode<synchronous>, transform_indices = @transform_8, window_bounds = array<i64: 128, 256>}, {pipeline_mode = #tpu.pipeline_mode<synchronous>, transform_indices = @transform_9, window_bounds = array<i64: 1, 256>}, {pipeline_mode = #tpu.pipeline_mode<synchronous>, transform_indices = @transform_10, window_bounds = array<i64: 128, 128>}, {pipeline_mode = #tpu.pipeline_mode<synchronous>, transform_indices = @transform_11, window_bounds = array<i64: 128, 128>}, {pipeline_mode = #tpu.pipeline_mode<synchronous>, transform_indices = @transform_12, window_bounds = array<i64: 1, 128>}, {pipeline_mode = #tpu.pipeline_mode<synchronous>, transform_indices = @transform_13, window_bounds = array<i64: 128, 256>}, {pipeline_mode = #tpu.pipeline_mode<synchronous>, transform_indices = @transform_14, window_bounds = array<i64: 1, 256>}, {pipeline_mode = #tpu.pipeline_mode<synchronous>, transform_indices = @transform_15, window_bounds = array<i64: 256, 896>}, {pipeline_mode = #tpu.pipeline_mode<synchronous>, transform_indices = @transform_16, window_bounds = array<i64: 1, 896>}, {transform_indices = @transform_17, window_bounds = array<i64: 16, 896>}, {transform_indices = @transform_18, window_bounds = array<i64: 16, 128>}, {transform_indices = @transform_19, window_bounds = array<i64: 16, 128>}, {transform_indices = @transform_20, window_bounds = array<i64: 16, 128>}]} {
    %c0 = arith.constant 0 : index
    %c0_0 = arith.constant 0 : index
    %0 = vector.load %arg1[%c0, %c0_0] : memref<16x896xbf16, #tpu.memory_space<vmem>>, vector<16x896xbf16>
    %c0_1 = arith.constant 0 : index
    %c0_2 = arith.constant 0 : index
    %1 = vector.load %arg2[%c0_1, %c0_2] : memref<16x128xbf16, #tpu.memory_space<vmem>>, vector<16x128xbf16>
    %c0_3 = arith.constant 0 : index
    %c0_4 = arith.constant 0 : index
    %2 = vector.load %arg4[%c0_3, %c0_4] : memref<896x256xbf16, #tpu.memory_space<vmem>>, vector<896x256xbf16>
    %cst = arith.constant dense<0.000000e+00> : vector<16x256xf32>
    %3 = tpu.matmul %0, %2, %cst {dimension_numbers = #tpu.dot_dimension_numbers<[1], [0], [0], [1], [0, 0, 1, 1], [], []>} : vector<16x896xbf16>, vector<896x256xbf16>, vector<16x256xf32> -> vector<16x256xf32>
    %c0_5 = arith.constant 0 : index
    %c0_6 = arith.constant 0 : index
    %4 = vector.load %arg5[%c0_5, %c0_6] : memref<128x256xbf16, #tpu.memory_space<vmem>>, vector<128x256xbf16>
    %cst_7 = arith.constant dense<0.000000e+00> : vector<16x256xf32>
    %5 = tpu.matmul %1, %4, %cst_7 {dimension_numbers = #tpu.dot_dimension_numbers<[1], [0], [0], [1], [0, 0, 1, 1], [], []>} : vector<16x128xbf16>, vector<128x256xbf16>, vector<16x256xf32> -> vector<16x256xf32>
    %6 = arith.addf %3, %5 : vector<16x256xf32>
    %c0_8 = arith.constant 0 : index
    %c0_9 = arith.constant 0 : index
    %7 = vector.load %arg6[%c0_8, %c0_9] : memref<1x256xf32, #tpu.memory_space<vmem>>, vector<1x256xf32>
    %8 = vector.broadcast %7 : vector<1x256xf32> to vector<16x256xf32>
    %9 = arith.addf %6, %8 : vector<16x256xf32>
    %cst_10 = arith.constant 0.000000e+00 : f32
    %10 = vector.broadcast %cst_10 : f32 to vector<16x256xf32>
    %11 = arith.maximumf %9, %10 : vector<16x256xf32>
    %12 = arith.truncf %11 : vector<16x256xf32> to vector<16x256xbf16>
    %c0_11 = arith.constant 0 : index
    %c0_12 = arith.constant 0 : index
    %13 = vector.load %arg7[%c0_11, %c0_12] : memref<256x128xbf16, #tpu.memory_space<vmem>>, vector<256x128xbf16>
    %cst_13 = arith.constant dense<0.000000e+00> : vector<16x128xf32>
    %14 = tpu.matmul %12, %13, %cst_13 {dimension_numbers = #tpu.dot_dimension_numbers<[1], [0], [0], [1], [0, 0, 1, 1], [], []>} : vector<16x256xbf16>, vector<256x128xbf16>, vector<16x128xf32> -> vector<16x128xf32>
    %c0_14 = arith.constant 0 : index
    %c0_15 = arith.constant 0 : index
    %15 = vector.load %arg8[%c0_14, %c0_15] : memref<1x128xf32, #tpu.memory_space<vmem>>, vector<1x128xf32>
    %16 = vector.broadcast %15 : vector<1x128xf32> to vector<16x128xf32>
    %17 = arith.addf %14, %16 : vector<16x128xf32>
    %cst_16 = arith.constant 0.000000e+00 : f32
    %18 = vector.broadcast %cst_16 : f32 to vector<16x128xf32>
    %19 = arith.maximumf %17, %18 : vector<16x128xf32>
    %20 = arith.truncf %19 : vector<16x128xf32> to vector<16x128xbf16>
    %c0_17 = arith.constant 0 : index
    %c0_18 = arith.constant 0 : index
    %21 = vector.load %arg9[%c0_17, %c0_18] : memref<128x256xbf16, #tpu.memory_space<vmem>>, vector<128x256xbf16>
    %cst_19 = arith.constant dense<0.000000e+00> : vector<16x256xf32>
    %22 = tpu.matmul %20, %21, %cst_19 {dimension_numbers = #tpu.dot_dimension_numbers<[1], [0], [0], [1], [0, 0, 1, 1], [], []>} : vector<16x128xbf16>, vector<128x256xbf16>, vector<16x256xf32> -> vector<16x256xf32>
    %c0_20 = arith.constant 0 : index
    %c0_21 = arith.constant 0 : index
    %23 = vector.load %arg10[%c0_20, %c0_21] : memref<1x256xf32, #tpu.memory_space<vmem>>, vector<1x256xf32>
    %24 = vector.broadcast %23 : vector<1x256xf32> to vector<16x256xf32>
    %25 = arith.addf %22, %24 : vector<16x256xf32>
    %26 = vector.extract_strided_slice %25 {offsets = [0, 0], sizes = [16, 128], strides = [1, 1]} : vector<16x256xf32> to vector<16x128xf32>
    %27 = vector.extract_strided_slice %25 {offsets = [0, 128], sizes = [16, 128], strides = [1, 1]} : vector<16x256xf32> to vector<16x128xf32>
    %cst_22 = arith.constant 5.000000e-01 : f32
    %28 = vector.broadcast %cst_22 : f32 to vector<16x128xf32>
    %29 = arith.mulf %28, %27 : vector<16x128xf32>
    %30 = math.exp %29 : vector<16x128xf32>
    %cst_23 = arith.constant 9.99999997E-7 : f32
    %31 = vector.broadcast %cst_23 : f32 to vector<16x128xf32>
    %32 = arith.addf %31, %30 : vector<16x128xf32>
    %c0_24 = arith.constant 0 : index
    %c0_25 = arith.constant 0 : index
    %33 = vector.load %arg3[%c0_24, %c0_25] : memref<16x128xf32, #tpu.memory_space<vmem>>, vector<16x128xf32>
    %34 = arith.mulf %32, %33 : vector<16x128xf32>
    %35 = arith.addf %26, %34 : vector<16x128xf32>
    %c0_26 = arith.constant 0 : index
    %c0_27 = arith.constant 0 : index
    %36 = vector.load %arg19[%c0_26, %c0_27] : memref<16x128xf32, #tpu.memory_space<vmem>>, vector<16x128xf32>
    tpu.vector_store %arg19[%c0_26, %c0_27], %26 {strides = array<i32>} : memref<16x128xf32, #tpu.memory_space<vmem>>, vector<16x128xf32>,
    %c0_28 = arith.constant 0 : index
    %c0_29 = arith.constant 0 : index
    %37 = vector.load %arg20[%c0_28, %c0_29] : memref<16x128xf32, #tpu.memory_space<vmem>>, vector<16x128xf32>
    tpu.vector_store %arg20[%c0_28, %c0_29], %32 {strides = array<i32>} : memref<16x128xf32, #tpu.memory_space<vmem>>, vector<16x128xf32>,
    %c0_30 = arith.constant 0 : index
    %c0_31 = arith.constant 0 : index
    %38 = vector.load %arg21[%c0_30, %c0_31] : memref<16x128xf32, #tpu.memory_space<vmem>>, vector<16x128xf32>
    tpu.vector_store %arg21[%c0_30, %c0_31], %35 {strides = array<i32>} : memref<16x128xf32, #tpu.memory_space<vmem>>, vector<16x128xf32>,
    %39 = arith.truncf %35 : vector<16x128xf32> to vector<16x128xbf16>
    %c0_32 = arith.constant 0 : index
    %c0_33 = arith.constant 0 : index
    %40 = vector.load %arg11[%c0_32, %c0_33] : memref<128x128xbf16, #tpu.memory_space<vmem>>, vector<128x128xbf16>
    %cst_34 = arith.constant dense<0.000000e+00> : vector<16x128xf32>
    %41 = tpu.matmul %39, %40, %cst_34 {dimension_numbers = #tpu.dot_dimension_numbers<[1], [0], [0], [1], [0, 0, 1, 1], [], []>} : vector<16x128xbf16>, vector<128x128xbf16>, vector<16x128xf32> -> vector<16x128xf32>
    %c0_35 = arith.constant 0 : index
    %c0_36 = arith.constant 0 : index
    %42 = vector.load %arg12[%c0_35, %c0_36] : memref<128x128xbf16, #tpu.memory_space<vmem>>, vector<128x128xbf16>
    %cst_37 = arith.constant dense<0.000000e+00> : vector<16x128xf32>
    %43 = tpu.matmul %1, %42, %cst_37 {dimension_numbers = #tpu.dot_dimension_numbers<[1], [0], [0], [1], [0, 0, 1, 1], [], []>} : vector<16x128xbf16>, vector<128x128xbf16>, vector<16x128xf32> -> vector<16x128xf32>
    %44 = arith.addf %41, %43 : vector<16x128xf32>
    %c0_38 = arith.constant 0 : index
    %c0_39 = arith.constant 0 : index
    %45 = vector.load %arg13[%c0_38, %c0_39] : memref<1x128xf32, #tpu.memory_space<vmem>>, vector<1x128xf32>
    %46 = vector.broadcast %45 : vector<1x128xf32> to vector<16x128xf32>
    %47 = arith.addf %44, %46 : vector<16x128xf32>
    %cst_40 = arith.constant 0.000000e+00 : f32
    %48 = vector.broadcast %cst_40 : f32 to vector<16x128xf32>
    %49 = arith.maximumf %47, %48 : vector<16x128xf32>
    %50 = arith.truncf %49 : vector<16x128xf32> to vector<16x128xbf16>
    %c0_41 = arith.constant 0 : index
    %c0_42 = arith.constant 0 : index
    %51 = vector.load %arg14[%c0_41, %c0_42] : memref<128x256xbf16, #tpu.memory_space<vmem>>, vector<128x256xbf16>
    %cst_43 = arith.constant dense<0.000000e+00> : vector<16x256xf32>
    %52 = tpu.matmul %50, %51, %cst_43 {dimension_numbers = #tpu.dot_dimension_numbers<[1], [0], [0], [1], [0, 0, 1, 1], [], []>} : vector<16x128xbf16>, vector<128x256xbf16>, vector<16x256xf32> -> vector<16x256xf32>
    %c0_44 = arith.constant 0 : index
    %c0_45 = arith.constant 0 : index
    %53 = vector.load %arg15[%c0_44, %c0_45] : memref<1x256xf32, #tpu.memory_space<vmem>>, vector<1x256xf32>
    %54 = vector.broadcast %53 : vector<1x256xf32> to vector<16x256xf32>
    %55 = arith.addf %52, %54 : vector<16x256xf32>
    %cst_46 = arith.constant 0.000000e+00 : f32
    %56 = vector.broadcast %cst_46 : f32 to vector<16x256xf32>
    %57 = arith.maximumf %55, %56 : vector<16x256xf32>
    %58 = arith.truncf %57 : vector<16x256xf32> to vector<16x256xbf16>
    %c0_47 = arith.constant 0 : index
    %c0_48 = arith.constant 0 : index
    %59 = vector.load %arg16[%c0_47, %c0_48] : memref<256x896xbf16, #tpu.memory_space<vmem>>, vector<256x896xbf16>
    %cst_49 = arith.constant dense<0.000000e+00> : vector<16x896xf32>
    %60 = tpu.matmul %58, %59, %cst_49 {dimension_numbers = #tpu.dot_dimension_numbers<[1], [0], [0], [1], [0, 0, 1, 1], [], []>} : vector<16x256xbf16>, vector<256x896xbf16>, vector<16x896xf32> -> vector<16x896xf32>
    %c0_50 = arith.constant 0 : index
    %c0_51 = arith.constant 0 : index
    %61 = vector.load %arg17[%c0_50, %c0_51] : memref<1x896xf32, #tpu.memory_space<vmem>>, vector<1x896xf32>
    %62 = vector.broadcast %61 : vector<1x896xf32> to vector<16x896xf32>
    %63 = arith.addf %60, %62 : vector<16x896xf32>
    %cst_52 = arith.constant 0.000000e+00 : f32
    %64 = vector.broadcast %cst_52 : f32 to vector<16x896xf32>
    %65 = arith.subf %64, %63 : vector<16x896xf32>
    %66 = math.exp %65 : vector<16x896xf32>
    %cst_53 = arith.constant 1.000000e+00 : f32
    %67 = vector.broadcast %cst_53 : f32 to vector<16x896xf32>
    %68 = arith.addf %67, %66 : vector<16x896xf32>
    %cst_54 = arith.constant 1.000000e+00 : f32
    %69 = vector.broadcast %cst_54 : f32 to vector<16x896xf32>
    %70 = arith.divf %69, %68 : vector<16x896xf32>
    %c0_55 = arith.constant 0 : index
    %c0_56 = arith.constant 0 : index
    %71 = vector.load %arg18[%c0_55, %c0_56] : memref<16x896xf32, #tpu.memory_space<vmem>>, vector<16x896xf32>
    tpu.vector_store %arg18[%c0_55, %c0_56], %70 {strides = array<i32>} : memref<16x896xf32, #tpu.memory_space<vmem>>, vector<16x896xf32>,
    return
  }
  func.func @transform_0(%arg0: i32) -> (i32, i32) {
    %c0_i32 = arith.constant 0 : i32
    %c0_i32_0 = arith.constant 0 : i32
    return %arg0, %c0_i32 : i32, i32
  }
  func.func @transform_1(%arg0: i32) -> (i32, i32) {
    %c0_i32 = arith.constant 0 : i32
    %c0_i32_0 = arith.constant 0 : i32
    return %arg0, %c0_i32 : i32, i32
  }
  func.func @transform_2(%arg0: i32) -> (i32, i32) {
    %c0_i32 = arith.constant 0 : i32
    %c0_i32_0 = arith.constant 0 : i32
    return %arg0, %c0_i32 : i32, i32
  }
  func.func @transform_3(%arg0: i32) -> (i32, i32) {
    %c0_i32 = arith.constant 0 : i32
    %c0_i32_0 = arith.constant 0 : i32
    %c0_i32_1 = arith.constant 0 : i32
    return %c0_i32, %c0_i32_0 : i32, i32
  }
  func.func @transform_4(%arg0: i32) -> (i32, i32) {
    %c0_i32 = arith.constant 0 : i32
    %c0_i32_0 = arith.constant 0 : i32
    %c0_i32_1 = arith.constant 0 : i32
    return %c0_i32, %c0_i32_0 : i32, i32
  }
  func.func @transform_5(%arg0: i32) -> (i32, i32) {
    %c0_i32 = arith.constant 0 : i32
    %c0_i32_0 = arith.constant 0 : i32
    %c0_i32_1 = arith.constant 0 : i32
    return %c0_i32, %c0_i32_0 : i32, i32
  }
  func.func @transform_6(%arg0: i32) -> (i32, i32) {
    %c0_i32 = arith.constant 0 : i32
    %c0_i32_0 = arith.constant 0 : i32
    %c0_i32_1 = arith.constant 0 : i32
    return %c0_i32, %c0_i32_0 : i32, i32
  }
  func.func @transform_7(%arg0: i32) -> (i32, i32) {
    %c0_i32 = arith.constant 0 : i32
    %c0_i32_0 = arith.constant 0 : i32
    %c0_i32_1 = arith.constant 0 : i32
    return %c0_i32, %c0_i32_0 : i32, i32
  }
  func.func @transform_8(%arg0: i32) -> (i32, i32) {
    %c0_i32 = arith.constant 0 : i32
    %c0_i32_0 = arith.constant 0 : i32
    %c0_i32_1 = arith.constant 0 : i32
    return %c0_i32, %c0_i32_0 : i32, i32
  }
  func.func @transform_9(%arg0: i32) -> (i32, i32) {
    %c0_i32 = arith.constant 0 : i32
    %c0_i32_0 = arith.constant 0 : i32
    %c0_i32_1 = arith.constant 0 : i32
    return %c0_i32, %c0_i32_0 : i32, i32
  }
  func.func @transform_10(%arg0: i32) -> (i32, i32) {
    %c0_i32 = arith.constant 0 : i32
    %c0_i32_0 = arith.constant 0 : i32
    %c0_i32_1 = arith.constant 0 : i32
    return %c0_i32, %c0_i32_0 : i32, i32
  }
  func.func @transform_11(%arg0: i32) -> (i32, i32) {
    %c0_i32 = arith.constant 0 : i32
    %c0_i32_0 = arith.constant 0 : i32
    %c0_i32_1 = arith.constant 0 : i32
    return %c0_i32, %c0_i32_0 : i32, i32
  }
  func.func @transform_12(%arg0: i32) -> (i32, i32) {
    %c0_i32 = arith.constant 0 : i32
    %c0_i32_0 = arith.constant 0 : i32
    %c0_i32_1 = arith.constant 0 : i32
    return %c0_i32, %c0_i32_0 : i32, i32
  }
  func.func @transform_13(%arg0: i32) -> (i32, i32) {
    %c0_i32 = arith.constant 0 : i32
    %c0_i32_0 = arith.constant 0 : i32
    %c0_i32_1 = arith.constant 0 : i32
    return %c0_i32, %c0_i32_0 : i32, i32
  }
  func.func @transform_14(%arg0: i32) -> (i32, i32) {
    %c0_i32 = arith.constant 0 : i32
    %c0_i32_0 = arith.constant 0 : i32
    %c0_i32_1 = arith.constant 0 : i32
    return %c0_i32, %c0_i32_0 : i32, i32
  }
  func.func @transform_15(%arg0: i32) -> (i32, i32) {
    %c0_i32 = arith.constant 0 : i32
    %c0_i32_0 = arith.constant 0 : i32
    %c0_i32_1 = arith.constant 0 : i32
    return %c0_i32, %c0_i32_0 : i32, i32
  }
  func.func @transform_16(%arg0: i32) -> (i32, i32) {
    %c0_i32 = arith.constant 0 : i32
    %c0_i32_0 = arith.constant 0 : i32
    %c0_i32_1 = arith.constant 0 : i32
    return %c0_i32, %c0_i32_0 : i32, i32
  }
  func.func @transform_17(%arg0: i32) -> (i32, i32) {
    %c0_i32 = arith.constant 0 : i32
    %c0_i32_0 = arith.constant 0 : i32
    return %arg0, %c0_i32 : i32, i32
  }
  func.func @transform_18(%arg0: i32) -> (i32, i32) {
    %c0_i32 = arith.constant 0 : i32
    %c0_i32_0 = arith.constant 0 : i32
    return %arg0, %c0_i32 : i32, i32
  }
  func.func @transform_19(%arg0: i32) -> (i32, i32) {
    %c0_i32 = arith.constant 0 : i32
    %c0_i32_0 = arith.constant 0 : i32
    return %arg0, %c0_i32 : i32, i32
  }
  func.func @transform_20(%arg0: i32) -> (i32, i32) {
    %c0_i32 = arith.constant 0 : i32
    %c0_i32_0 = arith.constant 0 : i32
    return %arg0, %c0_i32 : i32, i32
  }
}

</mosaic_0001>

<llo_original>
// kernel: cvae_mlp_forward.1
$region0: #{cvae_mlp_forward.1}
  #allocation0 [shape = 'u32[]', space=smem, size = 0x4, offset = 0x4, fixed_abs, tag = 'smem constant byte address 0x4 - core index']
  #allocation1 [shape = 'u32[72,128]{1,0:T(1,128)}', space=vmem, size = 0x9000, scoped, tag = 'internal scratch']
  %s0 = inlined_call_operand.vmem [shape: bf16[16,896], index: 0, kind: input, shape index: {}]
  %s1 = inlined_call_operand.vmem [shape: bf16[16,128], index: 1, kind: input, shape index: {}]
  %s2 = inlined_call_operand.vmem [shape: f32[16,128], index: 2, kind: input, shape index: {}]
  %s3 = inlined_call_operand.vmem [shape: bf16[896,256], index: 3, kind: input, shape index: {}]
  %s4 = inlined_call_operand.vmem [shape: bf16[128,256], index: 4, kind: input, shape index: {}]
  %s5 = inlined_call_operand.vmem [shape: f32[1,256], index: 5, kind: input, shape index: {}]
  %s6 = inlined_call_operand.vmem [shape: bf16[256,128], index: 6, kind: input, shape index: {}]
  %s7 = inlined_call_operand.vmem [shape: f32[1,128], index: 7, kind: input, shape index: {}]
  %s8 = inlined_call_operand.vmem [shape: bf16[128,256], index: 8, kind: input, shape index: {}]
  %s9 = inlined_call_operand.vmem [shape: f32[1,256], index: 9, kind: input, shape index: {}]
  %s10 = inlined_call_operand.vmem [shape: bf16[128,128], index: 10, kind: input, shape index: {}]
  %s11 = inlined_call_operand.vmem [shape: bf16[128,128], index: 11, kind: input, shape index: {}]
  %s12 = inlined_call_operand.vmem [shape: f32[1,128], index: 12, kind: input, shape index: {}]
  %s13 = inlined_call_operand.vmem [shape: bf16[128,256], index: 13, kind: input, shape index: {}]
  %s14 = inlined_call_operand.vmem [shape: f32[1,256], index: 14, kind: input, shape index: {}]
  %s15 = inlined_call_operand.vmem [shape: bf16[256,896], index: 15, kind: input, shape index: {}]
  %s16 = inlined_call_operand.vmem [shape: f32[1,896], index: 16, kind: input, shape index: {}]
  %s17 = inlined_call_operand.vmem [shape: f32[16,896], index: 17, kind: output, shape index: {0}]
  %s18 = inlined_call_operand.vmem [shape: f32[16,128], index: 18, kind: output, shape index: {1}]
  %s19 = inlined_call_operand.vmem [shape: f32[16,128], index: 19, kind: output, shape index: {2}]
  %s20 = inlined_call_operand.vmem [shape: f32[16,128], index: 20, kind: output, shape index: {3}]
  %21 = xla_tuple %s17, %s18, %s19, %s20
  %s22 = sld [smem:[#allocation0]]
  $region102: #{cvae_mlp_forward.1} parent=0
    _
  %s24 = ssub.s32 1, %s22
  %s25 = scalar_select 0, %s24, %s22
  // Predicated region
  $region2: #{cvae_mlp_forward.1} parent=0 // pred_check
    _
  $region3: #{cvae_mlp_forward.1} parent=0 // pred_check_branch
    %27 = sbr.rel (0) target = $region5
  $region4: #{cvae_mlp_forward.1} parent=0 // pred_region
    _
  $region5: #{cvae_mlp_forward.1} parent=0 // pred_fallthru
    _
  // Predicated region
  $region6: #{cvae_mlp_forward.1} parent=0 // pred_check
    _
  $region7: #{cvae_mlp_forward.1} parent=0 // pred_check_branch
    %29 = sbr.rel (0) target = $region9
  $region8: #{cvae_mlp_forward.1} parent=0 // pred_region
    _
  $region9: #{cvae_mlp_forward.1} parent=0 // pred_fallthru
    _
  // Predicated region
  $region10: #{cvae_mlp_forward.1} parent=0 // pred_check
    _
  $region11: #{cvae_mlp_forward.1} parent=0 // pred_check_branch
    %31 = sbr.rel (0) target = $region13
  $region12: #{cvae_mlp_forward.1} parent=0 // pred_region
    _
  $region13: #{cvae_mlp_forward.1} parent=0 // pred_fallthru
    _
  // Predicated region
  $region14: #{cvae_mlp_forward.1} parent=0 // pred_check
    _
  $region15: #{cvae_mlp_forward.1} parent=0 // pred_check_branch
    %33 = sbr.rel (0) target = $region17
  $region16: #{cvae_mlp_forward.1} parent=0 // pred_region
    _
  $region17: #{cvae_mlp_forward.1} parent=0 // pred_fallthru
    _
  // Predicated region
  $region18: #{cvae_mlp_forward.1} parent=0 // pred_check
    _
  $region19: #{cvae_mlp_forward.1} parent=0 // pred_check_branch
    %35 = sbr.rel (0) target = $region21
  $region20: #{cvae_mlp_forward.1} parent=0 // pred_region
    _
  $region21: #{cvae_mlp_forward.1} parent=0 // pred_fallthru
    _
  // Predicated region
  $region22: #{cvae_mlp_forward.1} parent=0 // pred_check
    _
  $region23: #{cvae_mlp_forward.1} parent=0 // pred_check_branch
    %37 = sbr.rel (0) target = $region25
  $region24: #{cvae_mlp_forward.1} parent=0 // pred_region
    _
  $region25: #{cvae_mlp_forward.1} parent=0 // pred_fallthru
    _
  // Predicated region
  $region26: #{cvae_mlp_forward.1} parent=0 // pred_check
    _
  $region27: #{cvae_mlp_forward.1} parent=0 // pred_check_branch
    %39 = sbr.rel (0) target = $region29
  $region28: #{cvae_mlp_forward.1} parent=0 // pred_region
    _
  $region29: #{cvae_mlp_forward.1} parent=0 // pred_fallthru
    _
  // Predicated region
  $region30: #{cvae_mlp_forward.1} parent=0 // pred_check
    _
  $region31: #{cvae_mlp_forward.1} parent=0 // pred_check_branch
    %41 = sbr.rel (0) target = $region33
  $region32: #{cvae_mlp_forward.1} parent=0 // pred_region
    _
  $region33: #{cvae_mlp_forward.1} parent=0 // pred_fallthru
    _
  // Predicated region
  $region34: #{cvae_mlp_forward.1} parent=0 // pred_check
    _
  $region35: #{cvae_mlp_forward.1} parent=0 // pred_check_branch
    %43 = sbr.rel (0) target = $region37
  $region36: #{cvae_mlp_forward.1} parent=0 // pred_region
    _
  $region37: #{cvae_mlp_forward.1} parent=0 // pred_fallthru
    _
  // Predicated region
  $region38: #{cvae_mlp_forward.1} parent=0 // pred_check
    _
  $region39: #{cvae_mlp_forward.1} parent=0 // pred_check_branch
    %45 = sbr.rel (0) target = $region41
  $region40: #{cvae_mlp_forward.1} parent=0 // pred_region
    _
  $region41: #{cvae_mlp_forward.1} parent=0 // pred_fallthru
    _
  // Predicated region
  $region42: #{cvae_mlp_forward.1} parent=0 // pred_check
    _
  $region43: #{cvae_mlp_forward.1} parent=0 // pred_check_branch
    %47 = sbr.rel (0) target = $region45
  $region44: #{cvae_mlp_forward.1} parent=0 // pred_region
    _
  $region45: #{cvae_mlp_forward.1} parent=0 // pred_fallthru
    _
  // Predicated region
  $region46: #{cvae_mlp_forward.1} parent=0 // pred_check
    _
  $region47: #{cvae_mlp_forward.1} parent=0 // pred_check_branch
    %49 = sbr.rel (0) target = $region49
  $region48: #{cvae_mlp_forward.1} parent=0 // pred_region
    _
  $region49: #{cvae_mlp_forward.1} parent=0 // pred_fallthru
    _
  // Predicated region
  $region50: #{cvae_mlp_forward.1} parent=0 // pred_check
    _
  $region51: #{cvae_mlp_forward.1} parent=0 // pred_check_branch
    %51 = sbr.rel (0) target = $region53
  $region52: #{cvae_mlp_forward.1} parent=0 // pred_region
    _
  $region53: #{cvae_mlp_forward.1} parent=0 // pred_fallthru
    _
  // Predicated region
  $region54: #{cvae_mlp_forward.1} parent=0 // pred_check
    _
  $region55: #{cvae_mlp_forward.1} parent=0 // pred_check_branch
    %53 = sbr.rel (0) target = $region57
  $region56: #{cvae_mlp_forward.1} parent=0 // pred_region
    _
  $region57: #{cvae_mlp_forward.1} parent=0 // pred_fallthru
    _
  // Predicated region
  $region58: #{cvae_mlp_forward.1} parent=0 // pred_check
    _
  $region59: #{cvae_mlp_forward.1} parent=0 // pred_check_branch
    %55 = sbr.rel (0) target = $region61
  $region60: #{cvae_mlp_forward.1} parent=0 // pred_region
    _
  $region61: #{cvae_mlp_forward.1} parent=0 // pred_fallthru
    _
  // Predicated region
  $region62: #{cvae_mlp_forward.1} parent=0 // pred_check
    _
  $region63: #{cvae_mlp_forward.1} parent=0 // pred_check_branch
    %57 = sbr.rel (0) target = $region65
  $region64: #{cvae_mlp_forward.1} parent=0 // pred_region
    _
  $region65: #{cvae_mlp_forward.1} parent=0 // pred_fallthru
    _
  // Predicated region
  $region66: #{cvae_mlp_forward.1} parent=0 // pred_check
    _
  $region67: #{cvae_mlp_forward.1} parent=0 // pred_check_branch
    %59 = sbr.rel (0) target = $region69
  $region68: #{cvae_mlp_forward.1} parent=0 // pred_region
    _
  $region69: #{cvae_mlp_forward.1} parent=0 // pred_fallthru
    _
  %v60 = vld [vmem:[%s0] sm:$0xff]
  %v61 = vld [vmem:[%s0 + $0x8] sm:$0xff]
  %v62 = vld [vmem:[%s0 + $0x10] sm:$0xff]
  %v63 = vld [vmem:[%s0 + $0x18] sm:$0xf]
  %v64 = vld [vmem:[%s0 + $0x1c] sm:$0xff]
  %v65 = vld [vmem:[%s0 + $0x24] sm:$0xff]
  %v66 = vld [vmem:[%s0 + $0x2c] sm:$0xff]
  %v67 = vld [vmem:[%s0 + $0x34] sm:$0xf]
  %v68 = vld [vmem:[%s1] sm:$0xf]
  %v69 = vld [vmem:[%s1 + $0x4] sm:$0xf]
  %v70 = vld [vmem:[%s3] sm:$0xff]
  %v71 = vld [vmem:[%s3 + $0x8] sm:$0xff]
  %v72 = vld [vmem:[%s3 + $0x10] sm:$0xff]
  %v73 = vld [vmem:[%s3 + $0x18] sm:$0xff]
  %v74 = vld [vmem:[%s3 + $0x20] sm:$0xff]
  %v75 = vld [vmem:[%s3 + $0x28] sm:$0xff]
  %v76 = vld [vmem:[%s3 + $0x30] sm:$0xff]
  %v77 = vld [vmem:[%s3 + $0x38] sm:$0xff]
  %v78 = vld [vmem:[%s3 + $0x40] sm:$0xff]
  %v79 = vld [vmem:[%s3 + $0x48] sm:$0xff]
  %v80 = vld [vmem:[%s3 + $0x50] sm:$0xff]
  %v81 = vld [vmem:[%s3 + $0x58] sm:$0xff]
  %v82 = vld [vmem:[%s3 + $0x60] sm:$0xff]
  %v83 = vld [vmem:[%s3 + $0x68] sm:$0xff]
  %v84 = vld [vmem:[%s3 + $0x70] sm:$0xff]
  %v85 = vld [vmem:[%s3 + $0x78] sm:$0xff]
  %v86 = vld [vmem:[%s3 + $0x80] sm:$0xff]
  %v87 = vld [vmem:[%s3 + $0x88] sm:$0xff]
  %v88 = vld [vmem:[%s3 + $0x90] sm:$0xff]
  %v89 = vld [vmem:[%s3 + $0x98] sm:$0xff]
  %v90 = vld [vmem:[%s3 + $0xa0] sm:$0xff]
  %v91 = vld [vmem:[%s3 + $0xa8] sm:$0xff]
  %v92 = vld [vmem:[%s3 + $0xb0] sm:$0xff]
  %v93 = vld [vmem:[%s3 + $0xb8] sm:$0xff]
  %v94 = vld [vmem:[%s3 + $0xc0] sm:$0xff]
  %v95 = vld [vmem:[%s3 + $0xc8] sm:$0xff]
  %v96 = vld [vmem:[%s3 + $0xd0] sm:$0xff]
  %v97 = vld [vmem:[%s3 + $0xd8] sm:$0xff]
  %v98 = vld [vmem:[%s3 + $0xe0] sm:$0xff]
  %v99 = vld [vmem:[%s3 + $0xe8] sm:$0xff]
  %v100 = vld [vmem:[%s3 + $0xf0] sm:$0xff]
  %v101 = vld [vmem:[%s3 + $0xf8] sm:$0xff]
  %v102 = vld [vmem:[%s3 + $0x100] sm:$0xff]
  %v103 = vld [vmem:[%s3 + $0x108] sm:$0xff]
  %v104 = vld [vmem:[%s3 + $0x110] sm:$0xff]
  %v105 = vld [vmem:[%s3 + $0x118] sm:$0xff]
  %v106 = vld [vmem:[%s3 + $0x120] sm:$0xff]
  %v107 = vld [vmem:[%s3 + $0x128] sm:$0xff]
  %v108 = vld [vmem:[%s3 + $0x130] sm:$0xff]
  %v109 = vld [vmem:[%s3 + $0x138] sm:$0xff]
  %v110 = vld [vmem:[%s3 + $0x140] sm:$0xff]
  %v111 = vld [vmem:[%s3 + $0x148] sm:$0xff]
  %v112 = vld [vmem:[%s3 + $0x150] sm:$0xff]
  %v113 = vld [vmem:[%s3 + $0x158] sm:$0xff]
  %v114 = vld [vmem:[%s3 + $0x160] sm:$0xff]
  %v115 = vld [vmem:[%s3 + $0x168] sm:$0xff]
  %v116 = vld [vmem:[%s3 + $0x170] sm:$0xff]
  %v117 = vld [vmem:[%s3 + $0x178] sm:$0xff]
  %v118 = vld [vmem:[%s3 + $0x180] sm:$0xff]
  %v119 = vld [vmem:[%s3 + $0x188] sm:$0xff]
  %v120 = vld [vmem:[%s3 + $0x190] sm:$0xff]
  %v121 = vld [vmem:[%s3 + $0x198] sm:$0xff]
  %v122 = vld [vmem:[%s3 + $0x1a0] sm:$0xff]
  %v123 = vld [vmem:[%s3 + $0x1a8] sm:$0xff]
  %v124 = vld [vmem:[%s3 + $0x1b0] sm:$0xff]
  %v125 = vld [vmem:[%s3 + $0x1b8] sm:$0xff]
  %v126 = vld [vmem:[%s3 + $0x1c0] sm:$0xff]
  %v127 = vld [vmem:[%s3 + $0x1c8] sm:$0xff]
  %v128 = vld [vmem:[%s3 + $0x1d0] sm:$0xff]
  %v129 = vld [vmem:[%s3 + $0x1d8] sm:$0xff]
  %v130 = vld [vmem:[%s3 + $0x1e0] sm:$0xff]
  %v131 = vld [vmem:[%s3 + $0x1e8] sm:$0xff]
  %v132 = vld [vmem:[%s3 + $0x1f0] sm:$0xff]
  %v133 = vld [vmem:[%s3 + $0x1f8] sm:$0xff]
  %v134 = vld [vmem:[%s3 + $0x200] sm:$0xff]
  %v135 = vld [vmem:[%s3 + $0x208] sm:$0xff]
  %v136 = vld [vmem:[%s3 + $0x210] sm:$0xff]
  %v137 = vld [vmem:[%s3 + $0x218] sm:$0xff]
  %v138 = vld [vmem:[%s3 + $0x220] sm:$0xff]
  %v139 = vld [vmem:[%s3 + $0x228] sm:$0xff]
  %v140 = vld [vmem:[%s3 + $0x230] sm:$0xff]
  %v141 = vld [vmem:[%s3 + $0x238] sm:$0xff]
  %v142 = vld [vmem:[%s3 + $0x240] sm:$0xff]
  %v143 = vld [vmem:[%s3 + $0x248] sm:$0xff]
  %v144 = vld [vmem:[%s3 + $0x250] sm:$0xff]
  %v145 = vld [vmem:[%s3 + $0x258] sm:$0xff]
  %v146 = vld [vmem:[%s3 + $0x260] sm:$0xff]
  %v147 = vld [vmem:[%s3 + $0x268] sm:$0xff]
  %v148 = vld [vmem:[%s3 + $0x270] sm:$0xff]
  %v149 = vld [vmem:[%s3 + $0x278] sm:$0xff]
  %v150 = vld [vmem:[%s3 + $0x280] sm:$0xff]
  %v151 = vld [vmem:[%s3 + $0x288] sm:$0xff]
  %v152 = vld [vmem:[%s3 + $0x290] sm:$0xff]
  %v153 = vld [vmem:[%s3 + $0x298] sm:$0xff]
  %v154 = vld [vmem:[%s3 + $0x2a0] sm:$0xff]
  %v155 = vld [vmem:[%s3 + $0x2a8] sm:$0xff]
  %v156 = vld [vmem:[%s3 + $0x2b0] sm:$0xff]
  %v157 = vld [vmem:[%s3 + $0x2b8] sm:$0xff]
  %v158 = vld [vmem:[%s3 + $0x2c0] sm:$0xff]
  %v159 = vld [vmem:[%s3 + $0x2c8] sm:$0xff]
  %v160 = vld [vmem:[%s3 + $0x2d0] sm:$0xff]
  %v161 = vld [vmem:[%s3 + $0x2d8] sm:$0xff]
  %v162 = vld [vmem:[%s3 + $0x2e0] sm:$0xff]
  %v163 = vld [vmem:[%s3 + $0x2e8] sm:$0xff]
  %v164 = vld [vmem:[%s3 + $0x2f0] sm:$0xff]
  %v165 = vld [vmem:[%s3 + $0x2f8] sm:$0xff]
  %v166 = vld [vmem:[%s3 + $0x300] sm:$0xff]
  %v167 = vld [vmem:[%s3 + $0x308] sm:$0xff]
  %v168 = vld [vmem:[%s3 + $0x310] sm:$0xff]
  %v169 = vld [vmem:[%s3 + $0x318] sm:$0xff]
  %v170 = vld [vmem:[%s3 + $0x320] sm:$0xff]
  %v171 = vld [vmem:[%s3 + $0x328] sm:$0xff]
  %v172 = vld [vmem:[%s3 + $0x330] sm:$0xff]
  %v173 = vld [vmem:[%s3 + $0x338] sm:$0xff]
  %v174 = vld [vmem:[%s3 + $0x340] sm:$0xff]
  %v175 = vld [vmem:[%s3 + $0x348] sm:$0xff]
  %v176 = vld [vmem:[%s3 + $0x350] sm:$0xff]
  %v177 = vld [vmem:[%s3 + $0x358] sm:$0xff]
  %v178 = vld [vmem:[%s3 + $0x360] sm:$0xff]
  %v179 = vld [vmem:[%s3 + $0x368] sm:$0xff]
  %v180 = vld [vmem:[%s3 + $0x370] sm:$0xff]
  %v181 = vld [vmem:[%s3 + $0x378] sm:$0xff]
  %v182 = vld [vmem:[%s4] sm:$0xff]
  %v183 = vld [vmem:[%s4 + $0x8] sm:$0xff]
  %v184 = vld [vmem:[%s4 + $0x10] sm:$0xff]
  %v185 = vld [vmem:[%s4 + $0x18] sm:$0xff]
  %v186 = vld [vmem:[%s4 + $0x20] sm:$0xff]
  %v187 = vld [vmem:[%s4 + $0x28] sm:$0xff]
  %v188 = vld [vmem:[%s4 + $0x30] sm:$0xff]
  %v189 = vld [vmem:[%s4 + $0x38] sm:$0xff]
  %v190 = vld [vmem:[%s4 + $0x40] sm:$0xff]
  %v191 = vld [vmem:[%s4 + $0x48] sm:$0xff]
  %v192 = vld [vmem:[%s4 + $0x50] sm:$0xff]
  %v193 = vld [vmem:[%s4 + $0x58] sm:$0xff]
  %v194 = vld [vmem:[%s4 + $0x60] sm:$0xff]
  %v195 = vld [vmem:[%s4 + $0x68] sm:$0xff]
  %v196 = vld [vmem:[%s4 + $0x70] sm:$0xff]
  %v197 = vld [vmem:[%s4 + $0x78] sm:$0xff]
  %v200 = vunpack.c.l.b16 %v68
  %v201 = vunpack.c.l.b16 %v69
  %v202 = vpack.c.b16 %v201, %v200
  %v220 = vunpack.c.l.b16 %v182
  %v221 = vunpack.c.h.b16 %v182
  %v222 = vunpack.c.l.b16 %v183
  %v223 = vunpack.c.h.b16 %v183
  %v224 = vunpack.c.l.b16 %v184
  %v225 = vunpack.c.h.b16 %v184
  %v226 = vunpack.c.l.b16 %v185
  %v227 = vunpack.c.h.b16 %v185
  %v228 = vunpack.c.l.b16 %v186
  %v229 = vunpack.c.h.b16 %v186
  %v230 = vunpack.c.l.b16 %v187
  %v231 = vunpack.c.h.b16 %v187
  %v232 = vunpack.c.l.b16 %v188
  %v233 = vunpack.c.h.b16 %v188
  %v234 = vunpack.c.l.b16 %v189
  %v235 = vunpack.c.h.b16 %v189
  %v236 = vunpack.c.l.b16 %v190
  %v237 = vunpack.c.h.b16 %v190
  %v238 = vunpack.c.l.b16 %v191
  %v239 = vunpack.c.h.b16 %v191
  %v240 = vunpack.c.l.b16 %v192
  %v241 = vunpack.c.h.b16 %v192
  %v242 = vunpack.c.l.b16 %v193
  %v243 = vunpack.c.h.b16 %v193
  %v244 = vunpack.c.l.b16 %v194
  %v245 = vunpack.c.h.b16 %v194
  %v246 = vunpack.c.l.b16 %v195
  %v247 = vunpack.c.h.b16 %v195
  %v248 = vunpack.c.l.b16 %v196
  %v249 = vunpack.c.h.b16 %v196
  %v250 = vunpack.c.l.b16 %v197
  %v251 = vunpack.c.h.b16 %v197
  %v252 = vpack.c.b16 %v222, %v220
  %v253 = vpack.c.b16 %v223, %v221
  %v254 = vpack.c.b16 %v226, %v224
  %v255 = vpack.c.b16 %v227, %v225
  %v256 = vpack.c.b16 %v230, %v228
  %v257 = vpack.c.b16 %v231, %v229
  %v258 = vpack.c.b16 %v234, %v232
  %v259 = vpack.c.b16 %v235, %v233
  %v260 = vpack.c.b16 %v238, %v236
  %v261 = vpack.c.b16 %v239, %v237
  %v262 = vpack.c.b16 %v242, %v240
  %v263 = vpack.c.b16 %v243, %v241
  %v264 = vpack.c.b16 %v246, %v244
  %v265 = vpack.c.b16 %v247, %v245
  %v266 = vpack.c.b16 %v250, %v248
  %v267 = vpack.c.b16 %v251, %v249
  %284 = vmatpush.bf16.msra.mxu0 %v266
  %285 = vmatpush.bf16.msra.mxu0 %v264
  %286 = vmatpush.bf16.msra.mxu0 %v262
  %287 = vmatpush.bf16.msra.mxu0 %v260
  %288 = vmatpush.bf16.msra.mxu0 %v258
  %289 = vmatpush.bf16.msra.mxu0 %v256
  %290 = vmatpush.bf16.msra.mxu0 %v254
  %291 = vmatpush.bf16.msra.mxu0 %v252
  %292 = vmatmul.bf16.gmra.mxu0 %v202
  %v293 = vpop.f32.mrf.mxu0
  %v294 = vadd.f32 0.0, %v293
  %v295 = vpop.f32.mrf.mxu0
  %v296 = vadd.f32 0.0, %v295
  %297 = vdwg.mxu0
  %298 = vmatpush.bf16.msra.mxu0 %v267
  %299 = vmatpush.bf16.msra.mxu0 %v265
  %300 = vmatpush.bf16.msra.mxu0 %v263
  %301 = vmatpush.bf16.msra.mxu0 %v261
  %302 = vmatpush.bf16.msra.mxu0 %v259
  %303 = vmatpush.bf16.msra.mxu0 %v257
  %304 = vmatpush.bf16.msra.mxu0 %v255
  %305 = vmatpush.bf16.msra.mxu0 %v253
  %306 = vmatmul.bf16.gmra.mxu0 %v202
  %v307 = vpop.f32.mrf.mxu0
  %v308 = vadd.f32 0.0, %v307
  %v309 = vpop.f32.mrf.mxu0
  %v310 = vadd.f32 0.0, %v309
  %311 = vdwg.mxu0
  %v320 = vunpack.c.l.b16 %v60
  %v321 = vunpack.c.h.b16 %v60
  %v322 = vunpack.c.l.b16 %v61
  %v323 = vunpack.c.h.b16 %v61
  %v324 = vunpack.c.l.b16 %v62
  %v325 = vunpack.c.h.b16 %v62
  %v326 = vunpack.c.l.b16 %v63
  %v327 = vunpack.c.l.b16 %v64
  %v328 = vunpack.c.h.b16 %v64
  %v329 = vunpack.c.l.b16 %v65
  %v330 = vunpack.c.h.b16 %v65
  %v331 = vunpack.c.l.b16 %v66
  %v332 = vunpack.c.h.b16 %v66
  %v333 = vunpack.c.l.b16 %v67
  %v334 = vpack.c.b16 %v327, %v320
  %v335 = vpack.c.b16 %v328, %v321
  %v336 = vpack.c.b16 %v329, %v322
  %v337 = vpack.c.b16 %v330, %v323
  %v338 = vpack.c.b16 %v331, %v324
  %v339 = vpack.c.b16 %v332, %v325
  %v340 = vpack.c.b16 %v333, %v326
  %v460 = vunpack.c.l.b16 %v70
  %v461 = vunpack.c.h.b16 %v70
  %v462 = vunpack.c.l.b16 %v71
  %v463 = vunpack.c.h.b16 %v71
  %v464 = vunpack.c.l.b16 %v72
  %v465 = vunpack.c.h.b16 %v72
  %v466 = vunpack.c.l.b16 %v73
  %v467 = vunpack.c.h.b16 %v73
  %v468 = vunpack.c.l.b16 %v74
  %v469 = vunpack.c.h.b16 %v74
  %v470 = vunpack.c.l.b16 %v75
  %v471 = vunpack.c.h.b16 %v75
  %v472 = vunpack.c.l.b16 %v76
  %v473 = vunpack.c.h.b16 %v76
  %v474 = vunpack.c.l.b16 %v77
  %v475 = vunpack.c.h.b16 %v77
  %v476 = vunpack.c.l.b16 %v78
  %v477 = vunpack.c.h.b16 %v78
  %v478 = vunpack.c.l.b16 %v79
  %v479 = vunpack.c.h.b16 %v79
  %v480 = vunpack.c.l.b16 %v80
  %v481 = vunpack.c.h.b16 %v80
  %v482 = vunpack.c.l.b16 %v81
  %v483 = vunpack.c.h.b16 %v81
  %v484 = vunpack.c.l.b16 %v82
  %v485 = vunpack.c.h.b16 %v82
  %v486 = vunpack.c.l.b16 %v83
  %v487 = vunpack.c.h.b16 %v83
  %v488 = vunpack.c.l.b16 %v84
  %v489 = vunpack.c.h.b16 %v84
  %v490 = vunpack.c.l.b16 %v85
  %v491 = vunpack.c.h.b16 %v85
  %v492 = vunpack.c.l.b16 %v86
  %v493 = vunpack.c.h.b16 %v86
  %v494 = vunpack.c.l.b16 %v87
  %v495 = vunpack.c.h.b16 %v87
  %v496 = vunpack.c.l.b16 %v88
  %v497 = vunpack.c.h.b16 %v88
  %v498 = vunpack.c.l.b16 %v89
  %v499 = vunpack.c.h.b16 %v89
  %v500 = vunpack.c.l.b16 %v90
  %v501 = vunpack.c.h.b16 %v90
  %v502 = vunpack.c.l.b16 %v91
  %v503 = vunpack.c.h.b16 %v91
  %v504 = vunpack.c.l.b16 %v92
  %v505 = vunpack.c.h.b16 %v92
  %v506 = vunpack.c.l.b16 %v93
  %v507 = vunpack.c.h.b16 %v93
  %v508 = vunpack.c.l.b16 %v94
  %v509 = vunpack.c.h.b16 %v94
  %v510 = vunpack.c.l.b16 %v95
  %v511 = vunpack.c.h.b16 %v95
  %v512 = vunpack.c.l.b16 %v96
  %v513 = vunpack.c.h.b16 %v96
  %v514 = vunpack.c.l.b16 %v97
  %v515 = vunpack.c.h.b16 %v97
  %v516 = vunpack.c.l.b16 %v98
  %v517 = vunpack.c.h.b16 %v98
  %v518 = vunpack.c.l.b16 %v99
  %v519 = vunpack.c.h.b16 %v99
  %v520 = vunpack.c.l.b16 %v100
  %v521 = vunpack.c.h.b16 %v100
  %v522 = vunpack.c.l.b16 %v101
  %v523 = vunpack.c.h.b16 %v101
  %v524 = vunpack.c.l.b16 %v102
  %v525 = vunpack.c.h.b16 %v102
  %v526 = vunpack.c.l.b16 %v103
  %v527 = vunpack.c.h.b16 %v103
  %v528 = vunpack.c.l.b16 %v104
  %v529 = vunpack.c.h.b16 %v104
  %v530 = vunpack.c.l.b16 %v105
  %v531 = vunpack.c.h.b16 %v105
  %v532 = vunpack.c.l.b16 %v106
  %v533 = vunpack.c.h.b16 %v106
  %v534 = vunpack.c.l.b16 %v107
  %v535 = vunpack.c.h.b16 %v107
  %v536 = vunpack.c.l.b16 %v108
  %v537 = vunpack.c.h.b16 %v108
  %v538 = vunpack.c.l.b16 %v109
  %v539 = vunpack.c.h.b16 %v109
  %v540 = vunpack.c.l.b16 %v110
  %v541 = vunpack.c.h.b16 %v110
  %v542 = vunpack.c.l.b16 %v111
  %v543 = vunpack.c.h.b16 %v111
  %v544 = vunpack.c.l.b16 %v112
  %v545 = vunpack.c.h.b16 %v112
  %v546 = vunpack.c.l.b16 %v113
  %v547 = vunpack.c.h.b16 %v113
  %v548 = vunpack.c.l.b16 %v114
  %v549 = vunpack.c.h.b16 %v114
  %v550 = vunpack.c.l.b16 %v115
  %v551 = vunpack.c.h.b16 %v115
  %v552 = vunpack.c.l.b16 %v116
  %v553 = vunpack.c.h.b16 %v116
  %v554 = vunpack.c.l.b16 %v117
  %v555 = vunpack.c.h.b16 %v117
  %v556 = vunpack.c.l.b16 %v118
  %v557 = vunpack.c.h.b16 %v118
  %v558 = vunpack.c.l.b16 %v119
  %v559 = vunpack.c.h.b16 %v119
  %v560 = vunpack.c.l.b16 %v120
  %v561 = vunpack.c.h.b16 %v120
  %v562 = vunpack.c.l.b16 %v121
  %v563 = vunpack.c.h.b16 %v121
  %v564 = vunpack.c.l.b16 %v122
  %v565 = vunpack.c.h.b16 %v122
  %v566 = vunpack.c.l.b16 %v123
  %v567 = vunpack.c.h.b16 %v123
  %v568 = vunpack.c.l.b16 %v124
  %v569 = vunpack.c.h.b16 %v124
  %v570 = vunpack.c.l.b16 %v125
  %v571 = vunpack.c.h.b16 %v125
  %v572 = vunpack.c.l.b16 %v126
  %v573 = vunpack.c.h.b16 %v126
  %v574 = vunpack.c.l.b16 %v127
  %v575 = vunpack.c.h.b16 %v127
  %v576 = vunpack.c.l.b16 %v128
  %v577 = vunpack.c.h.b16 %v128
  %v578 = vunpack.c.l.b16 %v129
  %v579 = vunpack.c.h.b16 %v129
  %v580 = vunpack.c.l.b16 %v130
  %v581 = vunpack.c.h.b16 %v130
  %v582 = vunpack.c.l.b16 %v131
  %v583 = vunpack.c.h.b16 %v131
  %v584 = vunpack.c.l.b16 %v132
  %v585 = vunpack.c.h.b16 %v132
  %v586 = vunpack.c.l.b16 %v133
  %v587 = vunpack.c.h.b16 %v133
  %v588 = vunpack.c.l.b16 %v134
  %v589 = vunpack.c.h.b16 %v134
  %v590 = vunpack.c.l.b16 %v135
  %v591 = vunpack.c.h.b16 %v135
  %v592 = vunpack.c.l.b16 %v136
  %v593 = vunpack.c.h.b16 %v136
  %v594 = vunpack.c.l.b16 %v137
  %v595 = vunpack.c.h.b16 %v137
  %v596 = vunpack.c.l.b16 %v138
  %v597 = vunpack.c.h.b16 %v138
  %v598 = vunpack.c.l.b16 %v139
  %v599 = vunpack.c.h.b16 %v139
  %v600 = vunpack.c.l.b16 %v140
  %v601 = vunpack.c.h.b16 %v140
  %v602 = vunpack.c.l.b16 %v141
  %v603 = vunpack.c.h.b16 %v141
  %v604 = vunpack.c.l.b16 %v142
  %v605 = vunpack.c.h.b16 %v142
  %v606 = vunpack.c.l.b16 %v143
  %v607 = vunpack.c.h.b16 %v143
  %v608 = vunpack.c.l.b16 %v144
  %v609 = vunpack.c.h.b16 %v144
  %v610 = vunpack.c.l.b16 %v145
  %v611 = vunpack.c.h.b16 %v145
  %v612 = vunpack.c.l.b16 %v146
  %v613 = vunpack.c.h.b16 %v146
  %v614 = vunpack.c.l.b16 %v147
  %v615 = vunpack.c.h.b16 %v147
  %v616 = vunpack.c.l.b16 %v148
  %v617 = vunpack.c.h.b16 %v148
  %v618 = vunpack.c.l.b16 %v149
  %v619 = vunpack.c.h.b16 %v149
  %v620 = vunpack.c.l.b16 %v150
  %v621 = vunpack.c.h.b16 %v150
  %v622 = vunpack.c.l.b16 %v151
  %v623 = vunpack.c.h.b16 %v151
  %v624 = vunpack.c.l.b16 %v152
  %v625 = vunpack.c.h.b16 %v152
  %v626 = vunpack.c.l.b16 %v153
  %v627 = vunpack.c.h.b16 %v153
  %v628 = vunpack.c.l.b16 %v154
  %v629 = vunpack.c.h.b16 %v154
  %v630 = vunpack.c.l.b16 %v155
  %v631 = vunpack.c.h.b16 %v155
  %v632 = vunpack.c.l.b16 %v156
  %v633 = vunpack.c.h.b16 %v156
  %v634 = vunpack.c.l.b16 %v157
  %v635 = vunpack.c.h.b16 %v157
  %v636 = vunpack.c.l.b16 %v158
  %v637 = vunpack.c.h.b16 %v158
  %v638 = vunpack.c.l.b16 %v159
  %v639 = vunpack.c.h.b16 %v159
  %v640 = vunpack.c.l.b16 %v160
  %v641 = vunpack.c.h.b16 %v160
  %v642 = vunpack.c.l.b16 %v161
  %v643 = vunpack.c.h.b16 %v161
  %v644 = vunpack.c.l.b16 %v162
  %v645 = vunpack.c.h.b16 %v162
  %v646 = vunpack.c.l.b16 %v163
  %v647 = vunpack.c.h.b16 %v163
  %v648 = vunpack.c.l.b16 %v164
  %v649 = vunpack.c.h.b16 %v164
  %v650 = vunpack.c.l.b16 %v165
  %v651 = vunpack.c.h.b16 %v165
  %v652 = vunpack.c.l.b16 %v166
  %v653 = vunpack.c.h.b16 %v166
  %v654 = vunpack.c.l.b16 %v167
  %v655 = vunpack.c.h.b16 %v167
  %v656 = vunpack.c.l.b16 %v168
  %v657 = vunpack.c.h.b16 %v168
  %v658 = vunpack.c.l.b16 %v169
  %v659 = vunpack.c.h.b16 %v169
  %v660 = vunpack.c.l.b16 %v170
  %v661 = vunpack.c.h.b16 %v170
  %v662 = vunpack.c.l.b16 %v171
  %v663 = vunpack.c.h.b16 %v171
  %v664 = vunpack.c.l.b16 %v172
  %v665 = vunpack.c.h.b16 %v172
  %v666 = vunpack.c.l.b16 %v173
  %v667 = vunpack.c.h.b16 %v173
  %v668 = vunpack.c.l.b16 %v174
  %v669 = vunpack.c.h.b16 %v174
  %v670 = vunpack.c.l.b16 %v175
  %v671 = vunpack.c.h.b16 %v175
  %v672 = vunpack.c.l.b16 %v176
  %v673 = vunpack.c.h.b16 %v176
  %v674 = vunpack.c.l.b16 %v177
  %v675 = vunpack.c.h.b16 %v177
  %v676 = vunpack.c.l.b16 %v178
  %v677 = vunpack.c.h.b16 %v178
  %v678 = vunpack.c.l.b16 %v179
  %v679 = vunpack.c.h.b16 %v179
  %v680 = vunpack.c.l.b16 %v180
  %v681 = vunpack.c.h.b16 %v180
  %v682 = vunpack.c.l.b16 %v181
  %v683 = vunpack.c.h.b16 %v181
  %v684 = vpack.c.b16 %v462, %v460
  %v685 = vpack.c.b16 %v463, %v461
  %v686 = vpack.c.b16 %v466, %v464
  %v687 = vpack.c.b16 %v467, %v465
  %v688 = vpack.c.b16 %v470, %v468
  %v689 = vpack.c.b16 %v471, %v469
  %v690 = vpack.c.b16 %v474, %v472
  %v691 = vpack.c.b16 %v475, %v473
  %v692 = vpack.c.b16 %v478, %v476
  %v693 = vpack.c.b16 %v479, %v477
  %v694 = vpack.c.b16 %v482, %v480
  %v695 = vpack.c.b16 %v483, %v481
  %v696 = vpack.c.b16 %v486, %v484
  %v697 = vpack.c.b16 %v487, %v485
  %v698 = vpack.c.b16 %v490, %v488
  %v699 = vpack.c.b16 %v491, %v489
  %v700 = vpack.c.b16 %v494, %v492
  %v701 = vpack.c.b16 %v495, %v493
  %v702 = vpack.c.b16 %v498, %v496
  %v703 = vpack.c.b16 %v499, %v497
  %v704 = vpack.c.b16 %v502, %v500
  %v705 = vpack.c.b16 %v503, %v501
  %v706 = vpack.c.b16 %v506, %v504
  %v707 = vpack.c.b16 %v507, %v505
  %v708 = vpack.c.b16 %v510, %v508
  %v709 = vpack.c.b16 %v511, %v509
  %v710 = vpack.c.b16 %v514, %v512
  %v711 = vpack.c.b16 %v515, %v513
  %v712 = vpack.c.b16 %v518, %v516
  %v713 = vpack.c.b16 %v519, %v517
  %v714 = vpack.c.b16 %v522, %v520
  %v715 = vpack.c.b16 %v523, %v521
  %v716 = vpack.c.b16 %v526, %v524
  %v717 = vpack.c.b16 %v527, %v525
  %v718 = vpack.c.b16 %v530, %v528
  %v719 = vpack.c.b16 %v531, %v529
  %v720 = vpack.c.b16 %v534, %v532
  %v721 = vpack.c.b16 %v535, %v533
  %v722 = vpack.c.b16 %v538, %v536
  %v723 = vpack.c.b16 %v539, %v537
  %v724 = vpack.c.b16 %v542, %v540
  %v725 = vpack.c.b16 %v543, %v541
  %v726 = vpack.c.b16 %v546, %v544
  %v727 = vpack.c.b16 %v547, %v545
  %v728 = vpack.c.b16 %v550, %v548
  %v729 = vpack.c.b16 %v551, %v549
  %v730 = vpack.c.b16 %v554, %v552
  %v731 = vpack.c.b16 %v555, %v553
  %v732 = vpack.c.b16 %v558, %v556
  %v733 = vpack.c.b16 %v559, %v557
  %v734 = vpack.c.b16 %v562, %v560
  %v735 = vpack.c.b16 %v563, %v561
  %v736 = vpack.c.b16 %v566, %v564
  %v737 = vpack.c.b16 %v567, %v565
  %v738 = vpack.c.b16 %v570, %v568
  %v739 = vpack.c.b16 %v571, %v569
  %v740 = vpack.c.b16 %v574, %v572
  %v741 = vpack.c.b16 %v575, %v573
  %v742 = vpack.c.b16 %v578, %v576
  %v743 = vpack.c.b16 %v579, %v577
  %v744 = vpack.c.b16 %v582, %v580
  %v745 = vpack.c.b16 %v583, %v581
  %v746 = vpack.c.b16 %v586, %v584
  %v747 = vpack.c.b16 %v587, %v585
  %v748 = vpack.c.b16 %v590, %v588
  %v749 = vpack.c.b16 %v591, %v589
  %v750 = vpack.c.b16 %v594, %v592
  %v751 = vpack.c.b16 %v595, %v593
  %v752 = vpack.c.b16 %v598, %v596
  %v753 = vpack.c.b16 %v599, %v597
  %v754 = vpack.c.b16 %v602, %v600
  %v755 = vpack.c.b16 %v603, %v601
  %v756 = vpack.c.b16 %v606, %v604
  %v757 = vpack.c.b16 %v607, %v605
  %v758 = vpack.c.b16 %v610, %v608
  %v759 = vpack.c.b16 %v611, %v609
  %v760 = vpack.c.b16 %v614, %v612
  %v761 = vpack.c.b16 %v615, %v613
  %v762 = vpack.c.b16 %v618, %v616
  %v763 = vpack.c.b16 %v619, %v617
  %v764 = vpack.c.b16 %v622, %v620
  %v765 = vpack.c.b16 %v623, %v621
  %v766 = vpack.c.b16 %v626, %v624
  %v767 = vpack.c.b16 %v627, %v625
  %v768 = vpack.c.b16 %v630, %v628
  %v769 = vpack.c.b16 %v631, %v629
  %v770 = vpack.c.b16 %v634, %v632
  %v771 = vpack.c.b16 %v635, %v633
  %v772 = vpack.c.b16 %v638, %v636
  %v773 = vpack.c.b16 %v639, %v637
  %v774 = vpack.c.b16 %v642, %v640
  %v775 = vpack.c.b16 %v643, %v641
  %v776 = vpack.c.b16 %v646, %v644
  %v777 = vpack.c.b16 %v647, %v645
  %v778 = vpack.c.b16 %v650, %v648
  %v779 = vpack.c.b16 %v651, %v649
  %v780 = vpack.c.b16 %v654, %v652
  %v781 = vpack.c.b16 %v655, %v653
  %v782 = vpack.c.b16 %v658, %v656
  %v783 = vpack.c.b16 %v659, %v657
  %v784 = vpack.c.b16 %v662, %v660
  %v785 = vpack.c.b16 %v663, %v661
  %v786 = vpack.c.b16 %v666, %v664
  %v787 = vpack.c.b16 %v667, %v665
  %v788 = vpack.c.b16 %v670, %v668
  %v789 = vpack.c.b16 %v671, %v669
  %v790 = vpack.c.b16 %v674, %v672
  %v791 = vpack.c.b16 %v675, %v673
  %v792 = vpack.c.b16 %v678, %v676
  %v793 = vpack.c.b16 %v679, %v677
  %v794 = vpack.c.b16 %v682, %v680
  %v795 = vpack.c.b16 %v683, %v681
  %908 = vmatpush.bf16.msra.mxu0 %v698
  %909 = vmatpush.bf16.msra.mxu0 %v696
  %910 = vmatpush.bf16.msra.mxu0 %v694
  %911 = vmatpush.bf16.msra.mxu0 %v692
  %912 = vmatpush.bf16.msra.mxu0 %v690
  %913 = vmatpush.bf16.msra.mxu0 %v688
  %914 = vmatpush.bf16.msra.mxu0 %v686
  %915 = vmatpush.bf16.msra.mxu0 %v684
  %916 = vmatmul.bf16.gmra.mxu0 %v334
  %v917 = vpop.f32.mrf.mxu0
  %v918 = vadd.f32 %v294, %v917
  %v919 = vpop.f32.mrf.mxu0
  %v920 = vadd.f32 %v296, %v919
  %921 = vdwg.mxu0
  %922 = vmatpush.bf16.msra.mxu0 %v714
  %923 = vmatpush.bf16.msra.mxu0 %v712
  %924 = vmatpush.bf16.msra.mxu0 %v710
  %925 = vmatpush.bf16.msra.mxu0 %v708
  %926 = vmatpush.bf16.msra.mxu0 %v706
  %927 = vmatpush.bf16.msra.mxu0 %v704
  %928 = vmatpush.bf16.msra.mxu0 %v702
  %929 = vmatpush.bf16.msra.mxu0 %v700
  %930 = vmatmul.bf16.gmra.mxu0 %v335
  %v931 = vpop.f32.mrf.mxu0
  %v932 = vadd.f32 %v918, %v931
  %v933 = vpop.f32.mrf.mxu0
  %v934 = vadd.f32 %v920, %v933
  %935 = vdwg.mxu0
  %936 = vmatpush.bf16.msra.mxu0 %v730
  %937 = vmatpush.bf16.msra.mxu0 %v728
  %938 = vmatpush.bf16.msra.mxu0 %v726
  %939 = vmatpush.bf16.msra.mxu0 %v724
  %940 = vmatpush.bf16.msra.mxu0 %v722
  %941 = vmatpush.bf16.msra.mxu0 %v720
  %942 = vmatpush.bf16.msra.mxu0 %v718
  %943 = vmatpush.bf16.msra.mxu0 %v716
  %944 = vmatmul.bf16.gmra.mxu0 %v336
  %v945 = vpop.f32.mrf.mxu0
  %v946 = vadd.f32 %v932, %v945
  %v947 = vpop.f32.mrf.mxu0
  %v948 = vadd.f32 %v934, %v947
  %949 = vdwg.mxu0
  %950 = vmatpush.bf16.msra.mxu0 %v746
  %951 = vmatpush.bf16.msra.mxu0 %v744
  %952 = vmatpush.bf16.msra.mxu0 %v742
  %953 = vmatpush.bf16.msra.mxu0 %v740
  %954 = vmatpush.bf16.msra.mxu0 %v738
  %955 = vmatpush.bf16.msra.mxu0 %v736
  %956 = vmatpush.bf16.msra.mxu0 %v734
  %957 = vmatpush.bf16.msra.mxu0 %v732
  %958 = vmatmul.bf16.gmra.mxu0 %v337
  %v959 = vpop.f32.mrf.mxu0
  %v960 = vadd.f32 %v946, %v959
  %v961 = vpop.f32.mrf.mxu0
  %v962 = vadd.f32 %v948, %v961
  %963 = vdwg.mxu0
  %964 = vmatpush.bf16.msra.mxu0 %v762
  %965 = vmatpush.bf16.msra.mxu0 %v760
  %966 = vmatpush.bf16.msra.mxu0 %v758
  %967 = vmatpush.bf16.msra.mxu0 %v756
  %968 = vmatpush.bf16.msra.mxu0 %v754
  %969 = vmatpush.bf16.msra.mxu0 %v752
  %970 = vmatpush.bf16.msra.mxu0 %v750
  %971 = vmatpush.bf16.msra.mxu0 %v748
  %972 = vmatmul.bf16.gmra.mxu0 %v338
  %v973 = vpop.f32.mrf.mxu0
  %v974 = vadd.f32 %v960, %v973
  %v975 = vpop.f32.mrf.mxu0
  %v976 = vadd.f32 %v962, %v975
  %977 = vdwg.mxu0
  %978 = vmatpush.bf16.msra.mxu0 %v778
  %979 = vmatpush.bf16.msra.mxu0 %v776
  %980 = vmatpush.bf16.msra.mxu0 %v774
  %981 = vmatpush.bf16.msra.mxu0 %v772
  %982 = vmatpush.bf16.msra.mxu0 %v770
  %983 = vmatpush.bf16.msra.mxu0 %v768
  %984 = vmatpush.bf16.msra.mxu0 %v766
  %985 = vmatpush.bf16.msra.mxu0 %v764
  %986 = vmatmul.bf16.gmra.mxu0 %v339
  %v987 = vpop.f32.mrf.mxu0
  %v988 = vadd.f32 %v974, %v987
  %v989 = vpop.f32.mrf.mxu0
  %v990 = vadd.f32 %v976, %v989
  %991 = vdwg.mxu0
  %992 = vmatpush.bf16.msra.mxu0 %v794
  %993 = vmatpush.bf16.msra.mxu0 %v792
  %994 = vmatpush.bf16.msra.mxu0 %v790
  %995 = vmatpush.bf16.msra.mxu0 %v788
  %996 = vmatpush.bf16.msra.mxu0 %v786
  %997 = vmatpush.bf16.msra.mxu0 %v784
  %998 = vmatpush.bf16.msra.mxu0 %v782
  %999 = vmatpush.bf16.msra.mxu0 %v780
  %1000 = vmatmul.bf16.gmra.mxu0 %v340
  %v1001 = vpop.f32.mrf.mxu0
  %v1002 = vadd.f32 %v988, %v1001
  %v1003 = vpop.f32.mrf.mxu0
  %v1004 = vadd.f32 %v990, %v1003
  %1005 = vdwg.mxu0
  %1006 = vmatpush.bf16.msra.mxu0 %v699
  %1007 = vmatpush.bf16.msra.mxu0 %v697
  %1008 = vmatpush.bf16.msra.mxu0 %v695
  %1009 = vmatpush.bf16.msra.mxu0 %v693
  %1010 = vmatpush.bf16.msra.mxu0 %v691
  %1011 = vmatpush.bf16.msra.mxu0 %v689
  %1012 = vmatpush.bf16.msra.mxu0 %v687
  %1013 = vmatpush.bf16.msra.mxu0 %v685
  %1014 = vmatmul.bf16.gmra.mxu0 %v334
  %v1015 = vpop.f32.mrf.mxu0
  %v1016 = vadd.f32 %v308, %v1015
  %v1017 = vpop.f32.mrf.mxu0
  %v1018 = vadd.f32 %v310, %v1017
  %1019 = vdwg.mxu0
  %1020 = vmatpush.bf16.msra.mxu0 %v715
  %1021 = vmatpush.bf16.msra.mxu0 %v713
  %1022 = vmatpush.bf16.msra.mxu0 %v711
  %1023 = vmatpush.bf16.msra.mxu0 %v709
  %1024 = vmatpush.bf16.msra.mxu0 %v707
  %1025 = vmatpush.bf16.msra.mxu0 %v705
  %1026 = vmatpush.bf16.msra.mxu0 %v703
  %1027 = vmatpush.bf16.msra.mxu0 %v701
  %1028 = vmatmul.bf16.gmra.mxu0 %v335
  %v1029 = vpop.f32.mrf.mxu0
  %v1030 = vadd.f32 %v1016, %v1029
  %v1031 = vpop.f32.mrf.mxu0
  %v1032 = vadd.f32 %v1018, %v1031
  %1033 = vdwg.mxu0
  %1034 = vmatpush.bf16.msra.mxu0 %v731
  %1035 = vmatpush.bf16.msra.mxu0 %v729
  %1036 = vmatpush.bf16.msra.mxu0 %v727
  %1037 = vmatpush.bf16.msra.mxu0 %v725
  %1038 = vmatpush.bf16.msra.mxu0 %v723
  %1039 = vmatpush.bf16.msra.mxu0 %v721
  %1040 = vmatpush.bf16.msra.mxu0 %v719
  %1041 = vmatpush.bf16.msra.mxu0 %v717
  %1042 = vmatmul.bf16.gmra.mxu0 %v336
  %v1043 = vpop.f32.mrf.mxu0
  %v1044 = vadd.f32 %v1030, %v1043
  %v1045 = vpop.f32.mrf.mxu0
  %v1046 = vadd.f32 %v1032, %v1045
  %1047 = vdwg.mxu0
  %1048 = vmatpush.bf16.msra.mxu0 %v747
  %1049 = vmatpush.bf16.msra.mxu0 %v745
  %1050 = vmatpush.bf16.msra.mxu0 %v743
  %1051 = vmatpush.bf16.msra.mxu0 %v741
  %1052 = vmatpush.bf16.msra.mxu0 %v739
  %1053 = vmatpush.bf16.msra.mxu0 %v737
  %1054 = vmatpush.bf16.msra.mxu0 %v735
  %1055 = vmatpush.bf16.msra.mxu0 %v733
  %1056 = vmatmul.bf16.gmra.mxu0 %v337
  %v1057 = vpop.f32.mrf.mxu0
  %v1058 = vadd.f32 %v1044, %v1057
  %v1059 = vpop.f32.mrf.mxu0
  %v1060 = vadd.f32 %v1046, %v1059
  %1061 = vdwg.mxu0
  %1062 = vmatpush.bf16.msra.mxu0 %v763
  %1063 = vmatpush.bf16.msra.mxu0 %v761
  %1064 = vmatpush.bf16.msra.mxu0 %v759
  %1065 = vmatpush.bf16.msra.mxu0 %v757
  %1066 = vmatpush.bf16.msra.mxu0 %v755
  %1067 = vmatpush.bf16.msra.mxu0 %v753
  %1068 = vmatpush.bf16.msra.mxu0 %v751
  %1069 = vmatpush.bf16.msra.mxu0 %v749
  %1070 = vmatmul.bf16.gmra.mxu0 %v338
  %v1071 = vpop.f32.mrf.mxu0
  %v1072 = vadd.f32 %v1058, %v1071
  %v1073 = vpop.f32.mrf.mxu0
  %v1074 = vadd.f32 %v1060, %v1073
  %1075 = vdwg.mxu0
  %1076 = vmatpush.bf16.msra.mxu0 %v779
  %1077 = vmatpush.bf16.msra.mxu0 %v777
  %1078 = vmatpush.bf16.msra.mxu0 %v775
  %1079 = vmatpush.bf16.msra.mxu0 %v773
  %1080 = vmatpush.bf16.msra.mxu0 %v771
  %1081 = vmatpush.bf16.msra.mxu0 %v769
  %1082 = vmatpush.bf16.msra.mxu0 %v767
  %1083 = vmatpush.bf16.msra.mxu0 %v765
  %1084 = vmatmul.bf16.gmra.mxu0 %v339
  %v1085 = vpop.f32.mrf.mxu0
  %v1086 = vadd.f32 %v1072, %v1085
  %v1087 = vpop.f32.mrf.mxu0
  %v1088 = vadd.f32 %v1074, %v1087
  %1089 = vdwg.mxu0
  %1090 = vmatpush.bf16.msra.mxu0 %v795
  %1091 = vmatpush.bf16.msra.mxu0 %v793
  %1092 = vmatpush.bf16.msra.mxu0 %v791
  %1093 = vmatpush.bf16.msra.mxu0 %v789
  %1094 = vmatpush.bf16.msra.mxu0 %v787
  %1095 = vmatpush.bf16.msra.mxu0 %v785
  %1096 = vmatpush.bf16.msra.mxu0 %v783
  %1097 = vmatpush.bf16.msra.mxu0 %v781
  %1098 = vmatmul.bf16.gmra.mxu0 %v340
  %v1099 = vpop.f32.mrf.mxu0
  %v1100 = vadd.f32 %v1086, %v1099
  %v1101 = vpop.f32.mrf.mxu0
  %v1102 = vadd.f32 %v1088, %v1101
  %1103 = vdwg.mxu0
  %v1104 = vld [vmem:[%s5] sm:$0x3]
  %v1106 = vperm.slane %v1104, 0
  %v1107 = vperm.slane %v1104, 1
  %v1110 = vadd.f32 %v1002, %v1106
  %v1111 = vadd.f32 %v1100, %v1107
  %v1112 = vadd.f32 %v1004, %v1106
  %v1113 = vadd.f32 %v1102, %v1107
  %v1114 = vmax.f32 %v1110, 0.0
  %v1115 = vmax.f32 %v1111, 0.0
  %v1116 = vmax.f32 %v1112, 0.0
  %v1117 = vmax.f32 %v1113, 0.0
  %v1118 = vpack.c.bf16 %v1116, %v1114
  %v1119 = vpack.c.bf16 %v1117, %v1115
  %v1120 = vld [vmem:[%s6] sm:$0xf]
  %v1121 = vld [vmem:[%s6 + $0x4] sm:$0xf]
  %v1122 = vld [vmem:[%s6 + $0x8] sm:$0xf]
  %v1123 = vld [vmem:[%s6 + $0xc] sm:$0xf]
  %v1124 = vld [vmem:[%s6 + $0x10] sm:$0xf]
  %v1125 = vld [vmem:[%s6 + $0x14] sm:$0xf]
  %v1126 = vld [vmem:[%s6 + $0x18] sm:$0xf]
  %v1127 = vld [vmem:[%s6 + $0x1c] sm:$0xf]
  %v1128 = vld [vmem:[%s6 + $0x20] sm:$0xf]
  %v1129 = vld [vmem:[%s6 + $0x24] sm:$0xf]
  %v1130 = vld [vmem:[%s6 + $0x28] sm:$0xf]
  %v1131 = vld [vmem:[%s6 + $0x2c] sm:$0xf]
  %v1132 = vld [vmem:[%s6 + $0x30] sm:$0xf]
  %v1133 = vld [vmem:[%s6 + $0x34] sm:$0xf]
  %v1134 = vld [vmem:[%s6 + $0x38] sm:$0xf]
  %v1135 = vld [vmem:[%s6 + $0x3c] sm:$0xf]
  %v1136 = vld [vmem:[%s6 + $0x40] sm:$0xf]
  %v1137 = vld [vmem:[%s6 + $0x44] sm:$0xf]
  %v1138 = vld [vmem:[%s6 + $0x48] sm:$0xf]
  %v1139 = vld [vmem:[%s6 + $0x4c] sm:$0xf]
  %v1140 = vld [vmem:[%s6 + $0x50] sm:$0xf]
  %v1141 = vld [vmem:[%s6 + $0x54] sm:$0xf]
  %v1142 = vld [vmem:[%s6 + $0x58] sm:$0xf]
  %v1143 = vld [vmem:[%s6 + $0x5c] sm:$0xf]
  %v1144 = vld [vmem:[%s6 + $0x60] sm:$0xf]
  %v1145 = vld [vmem:[%s6 + $0x64] sm:$0xf]
  %v1146 = vld [vmem:[%s6 + $0x68] sm:$0xf]
  %v1147 = vld [vmem:[%s6 + $0x6c] sm:$0xf]
  %v1148 = vld [vmem:[%s6 + $0x70] sm:$0xf]
  %v1149 = vld [vmem:[%s6 + $0x74] sm:$0xf]
  %v1150 = vld [vmem:[%s6 + $0x78] sm:$0xf]
  %v1151 = vld [vmem:[%s6 + $0x7c] sm:$0xf]
  %v1152 = vld [vmem:[%s7] sm:$0x1]
  %v1154 = vperm.slane %v1152, 0
  %v1188 = vunpack.c.l.b16 %v1120
  %v1189 = vunpack.c.l.b16 %v1121
  %v1190 = vunpack.c.l.b16 %v1122
  %v1191 = vunpack.c.l.b16 %v1123
  %v1192 = vunpack.c.l.b16 %v1124
  %v1193 = vunpack.c.l.b16 %v1125
  %v1194 = vunpack.c.l.b16 %v1126
  %v1195 = vunpack.c.l.b16 %v1127
  %v1196 = vunpack.c.l.b16 %v1128
  %v1197 = vunpack.c.l.b16 %v1129
  %v1198 = vunpack.c.l.b16 %v1130
  %v1199 = vunpack.c.l.b16 %v1131
  %v1200 = vunpack.c.l.b16 %v1132
  %v1201 = vunpack.c.l.b16 %v1133
  %v1202 = vunpack.c.l.b16 %v1134
  %v1203 = vunpack.c.l.b16 %v1135
  %v1204 = vunpack.c.l.b16 %v1136
  %v1205 = vunpack.c.l.b16 %v1137
  %v1206 = vunpack.c.l.b16 %v1138
  %v1207 = vunpack.c.l.b16 %v1139
  %v1208 = vunpack.c.l.b16 %v1140
  %v1209 = vunpack.c.l.b16 %v1141
  %v1210 = vunpack.c.l.b16 %v1142
  %v1211 = vunpack.c.l.b16 %v1143
  %v1212 = vunpack.c.l.b16 %v1144
  %v1213 = vunpack.c.l.b16 %v1145
  %v1214 = vunpack.c.l.b16 %v1146
  %v1215 = vunpack.c.l.b16 %v1147
  %v1216 = vunpack.c.l.b16 %v1148
  %v1217 = vunpack.c.l.b16 %v1149
  %v1218 = vunpack.c.l.b16 %v1150
  %v1219 = vunpack.c.l.b16 %v1151
  %v1220 = vpack.c.b16 %v1189, %v1188
  %v1221 = vpack.c.b16 %v1191, %v1190
  %v1222 = vpack.c.b16 %v1193, %v1192
  %v1223 = vpack.c.b16 %v1195, %v1194
  %v1224 = vpack.c.b16 %v1197, %v1196
  %v1225 = vpack.c.b16 %v1199, %v1198
  %v1226 = vpack.c.b16 %v1201, %v1200
  %v1227 = vpack.c.b16 %v1203, %v1202
  %v1228 = vpack.c.b16 %v1205, %v1204
  %v1229 = vpack.c.b16 %v1207, %v1206
  %v1230 = vpack.c.b16 %v1209, %v1208
  %v1231 = vpack.c.b16 %v1211, %v1210
  %v1232 = vpack.c.b16 %v1213, %v1212
  %v1233 = vpack.c.b16 %v1215, %v1214
  %v1234 = vpack.c.b16 %v1217, %v1216
  %v1235 = vpack.c.b16 %v1219, %v1218
  %1252 = vmatpush.bf16.msra.mxu0 %v1227
  %1253 = vmatpush.bf16.msra.mxu0 %v1226
  %1254 = vmatpush.bf16.msra.mxu0 %v1225
  %1255 = vmatpush.bf16.msra.mxu0 %v1224
  %1256 = vmatpush.bf16.msra.mxu0 %v1223
  %1257 = vmatpush.bf16.msra.mxu0 %v1222
  %1258 = vmatpush.bf16.msra.mxu0 %v1221
  %1259 = vmatpush.bf16.msra.mxu0 %v1220
  %1260 = vmatmul.bf16.gmra.mxu0 %v1118
  %v1261 = vpop.f32.mrf.mxu0
  %v1262 = vadd.f32 %v1154, %v1261
  %v1263 = vpop.f32.mrf.mxu0
  %v1264 = vadd.f32 %v1154, %v1263
  %1265 = vdwg.mxu0
  %1266 = vmatpush.bf16.msra.mxu0 %v1235
  %1267 = vmatpush.bf16.msra.mxu0 %v1234
  %1268 = vmatpush.bf16.msra.mxu0 %v1233
  %1269 = vmatpush.bf16.msra.mxu0 %v1232
  %1270 = vmatpush.bf16.msra.mxu0 %v1231
  %1271 = vmatpush.bf16.msra.mxu0 %v1230
  %1272 = vmatpush.bf16.msra.mxu0 %v1229
  %1273 = vmatpush.bf16.msra.mxu0 %v1228
  %1274 = vmatmul.bf16.gmra.mxu0 %v1119
  %v1275 = vpop.f32.mrf.mxu0
  %v1276 = vadd.f32 %v1262, %v1275
  %v1277 = vpop.f32.mrf.mxu0
  %v1278 = vadd.f32 %v1264, %v1277
  %1279 = vdwg.mxu0
  %v1280 = vmax.f32 %v1276, 0.0
  %v1281 = vmax.f32 %v1278, 0.0
  %v1282 = vpack.c.bf16 %v1281, %v1280
  %v1283 = vld [vmem:[%s8] sm:$0xff]
  %v1284 = vld [vmem:[%s8 + $0x8] sm:$0xff]
  %v1285 = vld [vmem:[%s8 + $0x10] sm:$0xff]
  %v1286 = vld [vmem:[%s8 + $0x18] sm:$0xff]
  %v1287 = vld [vmem:[%s8 + $0x20] sm:$0xff]
  %v1288 = vld [vmem:[%s8 + $0x28] sm:$0xff]
  %v1289 = vld [vmem:[%s8 + $0x30] sm:$0xff]
  %v1290 = vld [vmem:[%s8 + $0x38] sm:$0xff]
  %v1291 = vld [vmem:[%s8 + $0x40] sm:$0xff]
  %v1292 = vld [vmem:[%s8 + $0x48] sm:$0xff]
  %v1293 = vld [vmem:[%s8 + $0x50] sm:$0xff]
  %v1294 = vld [vmem:[%s8 + $0x58] sm:$0xff]
  %v1295 = vld [vmem:[%s8 + $0x60] sm:$0xff]
  %v1296 = vld [vmem:[%s8 + $0x68] sm:$0xff]
  %v1297 = vld [vmem:[%s8 + $0x70] sm:$0xff]
  %v1298 = vld [vmem:[%s8 + $0x78] sm:$0xff]
  %v1299 = vld [vmem:[%s9] sm:$0x3]
  %v1301 = vperm.slane %v1299, 0
  %v1302 = vperm.slane %v1299, 1
  %v1321 = vunpack.c.l.b16 %v1283
  %v1322 = vunpack.c.h.b16 %v1283
  %v1323 = vunpack.c.l.b16 %v1284
  %v1324 = vunpack.c.h.b16 %v1284
  %v1325 = vunpack.c.l.b16 %v1285
  %v1326 = vunpack.c.h.b16 %v1285
  %v1327 = vunpack.c.l.b16 %v1286
  %v1328 = vunpack.c.h.b16 %v1286
  %v1329 = vunpack.c.l.b16 %v1287
  %v1330 = vunpack.c.h.b16 %v1287
  %v1331 = vunpack.c.l.b16 %v1288
  %v1332 = vunpack.c.h.b16 %v1288
  %v1333 = vunpack.c.l.b16 %v1289
  %v1334 = vunpack.c.h.b16 %v1289
  %v1335 = vunpack.c.l.b16 %v1290
  %v1336 = vunpack.c.h.b16 %v1290
  %v1337 = vunpack.c.l.b16 %v1291
  %v1338 = vunpack.c.h.b16 %v1291
  %v1339 = vunpack.c.l.b16 %v1292
  %v1340 = vunpack.c.h.b16 %v1292
  %v1341 = vunpack.c.l.b16 %v1293
  %v1342 = vunpack.c.h.b16 %v1293
  %v1343 = vunpack.c.l.b16 %v1294
  %v1344 = vunpack.c.h.b16 %v1294
  %v1345 = vunpack.c.l.b16 %v1295
  %v1346 = vunpack.c.h.b16 %v1295
  %v1347 = vunpack.c.l.b16 %v1296
  %v1348 = vunpack.c.h.b16 %v1296
  %v1349 = vunpack.c.l.b16 %v1297
  %v1350 = vunpack.c.h.b16 %v1297
  %v1351 = vunpack.c.l.b16 %v1298
  %v1352 = vunpack.c.h.b16 %v1298
  %v1353 = vpack.c.b16 %v1323, %v1321
  %v1354 = vpack.c.b16 %v1324, %v1322
  %v1355 = vpack.c.b16 %v1327, %v1325
  %v1356 = vpack.c.b16 %v1328, %v1326
  %v1357 = vpack.c.b16 %v1331, %v1329
  %v1358 = vpack.c.b16 %v1332, %v1330
  %v1359 = vpack.c.b16 %v1335, %v1333
  %v1360 = vpack.c.b16 %v1336, %v1334
  %v1361 = vpack.c.b16 %v1339, %v1337
  %v1362 = vpack.c.b16 %v1340, %v1338
  %v1363 = vpack.c.b16 %v1343, %v1341
  %v1364 = vpack.c.b16 %v1344, %v1342
  %v1365 = vpack.c.b16 %v1347, %v1345
  %v1366 = vpack.c.b16 %v1348, %v1346
  %v1367 = vpack.c.b16 %v1351, %v1349
  %v1368 = vpack.c.b16 %v1352, %v1350
  %1385 = vmatpush.bf16.msra.mxu0 %v1367
  %1386 = vmatpush.bf16.msra.mxu0 %v1365
  %1387 = vmatpush.bf16.msra.mxu0 %v1363
  %1388 = vmatpush.bf16.msra.mxu0 %v1361
  %1389 = vmatpush.bf16.msra.mxu0 %v1359
  %1390 = vmatpush.bf16.msra.mxu0 %v1357
  %1391 = vmatpush.bf16.msra.mxu0 %v1355
  %1392 = vmatpush.bf16.msra.mxu0 %v1353
  %1393 = vmatmul.bf16.gmra.mxu0 %v1282
  %v1394 = vpop.f32.mrf.mxu0
  %v1395 = vadd.f32 %v1301, %v1394
  %v1396 = vpop.f32.mrf.mxu0
  %v1397 = vadd.f32 %v1301, %v1396
  %1398 = vdwg.mxu0
  %1399 = vmatpush.bf16.msra.mxu0 %v1368
  %1400 = vmatpush.bf16.msra.mxu0 %v1366
  %1401 = vmatpush.bf16.msra.mxu0 %v1364
  %1402 = vmatpush.bf16.msra.mxu0 %v1362
  %1403 = vmatpush.bf16.msra.mxu0 %v1360
  %1404 = vmatpush.bf16.msra.mxu0 %v1358
  %1405 = vmatpush.bf16.msra.mxu0 %v1356
  %1406 = vmatpush.bf16.msra.mxu0 %v1354
  %1407 = vmatmul.bf16.gmra.mxu0 %v1282
  %v1408 = vpop.f32.mrf.mxu0
  %v1409 = vadd.f32 %v1302, %v1408
  %v1410 = vpop.f32.mrf.mxu0
  %v1411 = vadd.f32 %v1302, %v1410
  %1412 = vdwg.mxu0
  %v1413 = vmul.f32 %v1409, 0.5
  %v1414 = vmul.f32 %v1411, 0.5
  %v1415 = vmul.f32 %v1413, 1.442695
  %v1416 = vpow.pop %v1415
  %v1417 = vmul.f32 %v1414, 1.442695
  %v1418 = vpow.pop %v1417
  %v1419 = vadd.f32 %v1416, 1e-06
  %v1420 = vadd.f32 %v1418, 1e-06
  %v1421 = vld [vmem:[%s2] sm:$0xff]
  %v1422 = vld [vmem:[%s2 + $0x8] sm:$0xff]
  %v1423 = vmul.f32 %v1419, %v1421
  %v1424 = vmul.f32 %v1420, %v1422
  %v1425 = vadd.f32 %v1395, %v1423
  %v1426 = vadd.f32 %v1397, %v1424
  %1427 = vst [vmem:[%s18] sm:$0xff] %v1395
  %1428 = vst [vmem:[%s18 + $0x8] sm:$0xff] %v1397
  %1429 = vst [vmem:[%s19] sm:$0xff] %v1419
  %1430 = vst [vmem:[%s19 + $0x8] sm:$0xff] %v1420
  %1431 = vst [vmem:[%s20] sm:$0xff] %v1425
  %1432 = vst [vmem:[%s20 + $0x8] sm:$0xff] %v1426
  %v1433 = vpack.c.bf16 %v1426, %v1425
  %v1434 = vld [vmem:[%s10] sm:$0xf]
  %v1435 = vld [vmem:[%s10 + $0x4] sm:$0xf]
  %v1436 = vld [vmem:[%s10 + $0x8] sm:$0xf]
  %v1437 = vld [vmem:[%s10 + $0xc] sm:$0xf]
  %v1438 = vld [vmem:[%s10 + $0x10] sm:$0xf]
  %v1439 = vld [vmem:[%s10 + $0x14] sm:$0xf]
  %v1440 = vld [vmem:[%s10 + $0x18] sm:$0xf]
  %v1441 = vld [vmem:[%s10 + $0x1c] sm:$0xf]
  %v1442 = vld [vmem:[%s10 + $0x20] sm:$0xf]
  %v1443 = vld [vmem:[%s10 + $0x24] sm:$0xf]
  %v1444 = vld [vmem:[%s10 + $0x28] sm:$0xf]
  %v1445 = vld [vmem:[%s10 + $0x2c] sm:$0xf]
  %v1446 = vld [vmem:[%s10 + $0x30] sm:$0xf]
  %v1447 = vld [vmem:[%s10 + $0x34] sm:$0xf]
  %v1448 = vld [vmem:[%s10 + $0x38] sm:$0xf]
  %v1449 = vld [vmem:[%s10 + $0x3c] sm:$0xf]
  %v1450 = vld [vmem:[%s11] sm:$0xf]
  %v1451 = vld [vmem:[%s11 + $0x4] sm:$0xf]
  %v1452 = vld [vmem:[%s11 + $0x8] sm:$0xf]
  %v1453 = vld [vmem:[%s11 + $0xc] sm:$0xf]
  %v1454 = vld [vmem:[%s11 + $0x10] sm:$0xf]
  %v1455 = vld [vmem:[%s11 + $0x14] sm:$0xf]
  %v1456 = vld [vmem:[%s11 + $0x18] sm:$0xf]
  %v1457 = vld [vmem:[%s11 + $0x1c] sm:$0xf]
  %v1458 = vld [vmem:[%s11 + $0x20] sm:$0xf]
  %v1459 = vld [vmem:[%s11 + $0x24] sm:$0xf]
  %v1460 = vld [vmem:[%s11 + $0x28] sm:$0xf]
  %v1461 = vld [vmem:[%s11 + $0x2c] sm:$0xf]
  %v1462 = vld [vmem:[%s11 + $0x30] sm:$0xf]
  %v1463 = vld [vmem:[%s11 + $0x34] sm:$0xf]
  %v1464 = vld [vmem:[%s11 + $0x38] sm:$0xf]
  %v1465 = vld [vmem:[%s11 + $0x3c] sm:$0xf]
  %v1482 = vunpack.c.l.b16 %v1450
  %v1483 = vunpack.c.l.b16 %v1451
  %v1484 = vunpack.c.l.b16 %v1452
  %v1485 = vunpack.c.l.b16 %v1453
  %v1486 = vunpack.c.l.b16 %v1454
  %v1487 = vunpack.c.l.b16 %v1455
  %v1488 = vunpack.c.l.b16 %v1456
  %v1489 = vunpack.c.l.b16 %v1457
  %v1490 = vunpack.c.l.b16 %v1458
  %v1491 = vunpack.c.l.b16 %v1459
  %v1492 = vunpack.c.l.b16 %v1460
  %v1493 = vunpack.c.l.b16 %v1461
  %v1494 = vunpack.c.l.b16 %v1462
  %v1495 = vunpack.c.l.b16 %v1463
  %v1496 = vunpack.c.l.b16 %v1464
  %v1497 = vunpack.c.l.b16 %v1465
  %v1498 = vpack.c.b16 %v1483, %v1482
  %v1499 = vpack.c.b16 %v1485, %v1484
  %v1500 = vpack.c.b16 %v1487, %v1486
  %v1501 = vpack.c.b16 %v1489, %v1488
  %v1502 = vpack.c.b16 %v1491, %v1490
  %v1503 = vpack.c.b16 %v1493, %v1492
  %v1504 = vpack.c.b16 %v1495, %v1494
  %v1505 = vpack.c.b16 %v1497, %v1496
  %1514 = vmatpush.bf16.msra.mxu0 %v1505
  %1515 = vmatpush.bf16.msra.mxu0 %v1504
  %1516 = vmatpush.bf16.msra.mxu0 %v1503
  %1517 = vmatpush.bf16.msra.mxu0 %v1502
  %1518 = vmatpush.bf16.msra.mxu0 %v1501
  %1519 = vmatpush.bf16.msra.mxu0 %v1500
  %1520 = vmatpush.bf16.msra.mxu0 %v1499
  %1521 = vmatpush.bf16.msra.mxu0 %v1498
  %1522 = vmatmul.bf16.gmra.mxu0 %v202
  %v1523 = vpop.f32.mrf.mxu0
  %v1524 = vadd.f32 0.0, %v1523
  %v1525 = vpop.f32.mrf.mxu0
  %v1526 = vadd.f32 0.0, %v1525
  %1527 = vdwg.mxu0
  %v1544 = vunpack.c.l.b16 %v1434
  %v1545 = vunpack.c.l.b16 %v1435
  %v1546 = vunpack.c.l.b16 %v1436
  %v1547 = vunpack.c.l.b16 %v1437
  %v1548 = vunpack.c.l.b16 %v1438
  %v1549 = vunpack.c.l.b16 %v1439
  %v1550 = vunpack.c.l.b16 %v1440
  %v1551 = vunpack.c.l.b16 %v1441
  %v1552 = vunpack.c.l.b16 %v1442
  %v1553 = vunpack.c.l.b16 %v1443
  %v1554 = vunpack.c.l.b16 %v1444
  %v1555 = vunpack.c.l.b16 %v1445
  %v1556 = vunpack.c.l.b16 %v1446
  %v1557 = vunpack.c.l.b16 %v1447
  %v1558 = vunpack.c.l.b16 %v1448
  %v1559 = vunpack.c.l.b16 %v1449
  %v1560 = vpack.c.b16 %v1545, %v1544
  %v1561 = vpack.c.b16 %v1547, %v1546
  %v1562 = vpack.c.b16 %v1549, %v1548
  %v1563 = vpack.c.b16 %v1551, %v1550
  %v1564 = vpack.c.b16 %v1553, %v1552
  %v1565 = vpack.c.b16 %v1555, %v1554
  %v1566 = vpack.c.b16 %v1557, %v1556
  %v1567 = vpack.c.b16 %v1559, %v1558
  %1576 = vmatpush.bf16.msra.mxu0 %v1567
  %1577 = vmatpush.bf16.msra.mxu0 %v1566
  %1578 = vmatpush.bf16.msra.mxu0 %v1565
  %1579 = vmatpush.bf16.msra.mxu0 %v1564
  %1580 = vmatpush.bf16.msra.mxu0 %v1563
  %1581 = vmatpush.bf16.msra.mxu0 %v1562
  %1582 = vmatpush.bf16.msra.mxu0 %v1561
  %1583 = vmatpush.bf16.msra.mxu0 %v1560
  %1584 = vmatmul.bf16.gmra.mxu0 %v1433
  %v1585 = vpop.f32.mrf.mxu0
  %v1586 = vadd.f32 %v1524, %v1585
  %v1587 = vpop.f32.mrf.mxu0
  %v1588 = vadd.f32 %v1526, %v1587
  %1589 = vdwg.mxu0
  %v1590 = vld [vmem:[%s12] sm:$0x1]
  %v1592 = vperm.slane %v1590, 0
  %v1594 = vadd.f32 %v1586, %v1592
  %v1595 = vadd.f32 %v1588, %v1592
  %v1596 = vmax.f32 %v1594, 0.0
  %v1597 = vmax.f32 %v1595, 0.0
  %v1598 = vpack.c.bf16 %v1597, %v1596
  %v1599 = vld [vmem:[%s13] sm:$0xff]
  %v1600 = vld [vmem:[%s13 + $0x8] sm:$0xff]
  %v1601 = vld [vmem:[%s13 + $0x10] sm:$0xff]
  %v1602 = vld [vmem:[%s13 + $0x18] sm:$0xff]
  %v1603 = vld [vmem:[%s13 + $0x20] sm:$0xff]
  %v1604 = vld [vmem:[%s13 + $0x28] sm:$0xff]
  %v1605 = vld [vmem:[%s13 + $0x30] sm:$0xff]
  %v1606 = vld [vmem:[%s13 + $0x38] sm:$0xff]
  %v1607 = vld [vmem:[%s13 + $0x40] sm:$0xff]
  %v1608 = vld [vmem:[%s13 + $0x48] sm:$0xff]
  %v1609 = vld [vmem:[%s13 + $0x50] sm:$0xff]
  %v1610 = vld [vmem:[%s13 + $0x58] sm:$0xff]
  %v1611 = vld [vmem:[%s13 + $0x60] sm:$0xff]
  %v1612 = vld [vmem:[%s13 + $0x68] sm:$0xff]
  %v1613 = vld [vmem:[%s13 + $0x70] sm:$0xff]
  %v1614 = vld [vmem:[%s13 + $0x78] sm:$0xff]
  %v1615 = vld [vmem:[%s14] sm:$0x3]
  %v1617 = vperm.slane %v1615, 0
  %v1618 = vperm.slane %v1615, 1
  %v1637 = vunpack.c.l.b16 %v1599
  %v1638 = vunpack.c.h.b16 %v1599
  %v1639 = vunpack.c.l.b16 %v1600
  %v1640 = vunpack.c.h.b16 %v1600
  %v1641 = vunpack.c.l.b16 %v1601
  %v1642 = vunpack.c.h.b16 %v1601
  %v1643 = vunpack.c.l.b16 %v1602
  %v1644 = vunpack.c.h.b16 %v1602
  %v1645 = vunpack.c.l.b16 %v1603
  %v1646 = vunpack.c.h.b16 %v1603
  %v1647 = vunpack.c.l.b16 %v1604
  %v1648 = vunpack.c.h.b16 %v1604
  %v1649 = vunpack.c.l.b16 %v1605
  %v1650 = vunpack.c.h.b16 %v1605
  %v1651 = vunpack.c.l.b16 %v1606
  %v1652 = vunpack.c.h.b16 %v1606
  %v1653 = vunpack.c.l.b16 %v1607
  %v1654 = vunpack.c.h.b16 %v1607
  %v1655 = vunpack.c.l.b16 %v1608
  %v1656 = vunpack.c.h.b16 %v1608
  %v1657 = vunpack.c.l.b16 %v1609
  %v1658 = vunpack.c.h.b16 %v1609
  %v1659 = vunpack.c.l.b16 %v1610
  %v1660 = vunpack.c.h.b16 %v1610
  %v1661 = vunpack.c.l.b16 %v1611
  %v1662 = vunpack.c.h.b16 %v1611
  %v1663 = vunpack.c.l.b16 %v1612
  %v1664 = vunpack.c.h.b16 %v1612
  %v1665 = vunpack.c.l.b16 %v1613
  %v1666 = vunpack.c.h.b16 %v1613
  %v1667 = vunpack.c.l.b16 %v1614
  %v1668 = vunpack.c.h.b16 %v1614
  %v1669 = vpack.c.b16 %v1639, %v1637
  %v1670 = vpack.c.b16 %v1640, %v1638
  %v1671 = vpack.c.b16 %v1643, %v1641
  %v1672 = vpack.c.b16 %v1644, %v1642
  %v1673 = vpack.c.b16 %v1647, %v1645
  %v1674 = vpack.c.b16 %v1648, %v1646
  %v1675 = vpack.c.b16 %v1651, %v1649
  %v1676 = vpack.c.b16 %v1652, %v1650
  %v1677 = vpack.c.b16 %v1655, %v1653
  %v1678 = vpack.c.b16 %v1656, %v1654
  %v1679 = vpack.c.b16 %v1659, %v1657
  %v1680 = vpack.c.b16 %v1660, %v1658
  %v1681 = vpack.c.b16 %v1663, %v1661
  %v1682 = vpack.c.b16 %v1664, %v1662
  %v1683 = vpack.c.b16 %v1667, %v1665
  %v1684 = vpack.c.b16 %v1668, %v1666
  %1701 = vmatpush.bf16.msra.mxu0 %v1683
  %1702 = vmatpush.bf16.msra.mxu0 %v1681
  %1703 = vmatpush.bf16.msra.mxu0 %v1679
  %1704 = vmatpush.bf16.msra.mxu0 %v1677
  %1705 = vmatpush.bf16.msra.mxu0 %v1675
  %1706 = vmatpush.bf16.msra.mxu0 %v1673
  %1707 = vmatpush.bf16.msra.mxu0 %v1671
  %1708 = vmatpush.bf16.msra.mxu0 %v1669
  %1709 = vmatmul.bf16.gmra.mxu0 %v1598
  %v1710 = vpop.f32.mrf.mxu0
  %v1711 = vadd.f32 %v1617, %v1710
  %v1712 = vpop.f32.mrf.mxu0
  %v1713 = vadd.f32 %v1617, %v1712
  %1714 = vdwg.mxu0
  %1715 = vmatpush.bf16.msra.mxu0 %v1684
  %1716 = vmatpush.bf16.msra.mxu0 %v1682
  %1717 = vmatpush.bf16.msra.mxu0 %v1680
  %1718 = vmatpush.bf16.msra.mxu0 %v1678
  %1719 = vmatpush.bf16.msra.mxu0 %v1676
  %1720 = vmatpush.bf16.msra.mxu0 %v1674
  %1721 = vmatpush.bf16.msra.mxu0 %v1672
  %1722 = vmatpush.bf16.msra.mxu0 %v1670
  %1723 = vmatmul.bf16.gmra.mxu0 %v1598
  %v1724 = vpop.f32.mrf.mxu0
  %v1725 = vadd.f32 %v1618, %v1724
  %v1726 = vpop.f32.mrf.mxu0
  %v1727 = vadd.f32 %v1618, %v1726
  %1728 = vdwg.mxu0
  %v1729 = vmax.f32 %v1711, 0.0
  %v1730 = vmax.f32 %v1725, 0.0
  %v1731 = vmax.f32 %v1713, 0.0
  %v1732 = vmax.f32 %v1727, 0.0
  %v1733 = vpack.c.bf16 %v1731, %v1729
  %v1734 = vpack.c.bf16 %v1732, %v1730
  %v1735 = vld [vmem:[%s15] sm:$0xff]
  %v1736 = vld [vmem:[%s15 + $0x8] sm:$0xff]
  %v1737 = vld [vmem:[%s15 + $0x10] sm:$0xff]
  %v1738 = vld [vmem:[%s15 + $0x18] sm:$0xf]
  %v1739 = vld [vmem:[%s15 + $0x1c] sm:$0xff]
  %v1740 = vld [vmem:[%s15 + $0x24] sm:$0xff]
  %v1741 = vld [vmem:[%s15 + $0x2c] sm:$0xff]
  %v1742 = vld [vmem:[%s15 + $0x34] sm:$0xf]
  %v1743 = vld [vmem:[%s15 + $0x38] sm:$0xff]
  %v1744 = vld [vmem:[%s15 + $0x40] sm:$0xff]
  %v1745 = vld [vmem:[%s15 + $0x48] sm:$0xff]
  %v1746 = vld [vmem:[%s15 + $0x50] sm:$0xf]
  %v1747 = vld [vmem:[%s15 + $0x54] sm:$0xff]
  %v1748 = vld [vmem:[%s15 + $0x5c] sm:$0xff]
  %v1749 = vld [vmem:[%s15 + $0x64] sm:$0xff]
  %v1750 = vld [vmem:[%s15 + $0x6c] sm:$0xf]
  %v1751 = vld [vmem:[%s15 + $0x70] sm:$0xff]
  %v1752 = vld [vmem:[%s15 + $0x78] sm:$0xff]
  %v1753 = vld [vmem:[%s15 + $0x80] sm:$0xff]
  %v1754 = vld [vmem:[%s15 + $0x88] sm:$0xf]
  %v1755 = vld [vmem:[%s15 + $0x8c] sm:$0xff]
  %v1756 = vld [vmem:[%s15 + $0x94] sm:$0xff]
  %v1757 = vld [vmem:[%s15 + $0x9c] sm:$0xff]
  %v1758 = vld [vmem:[%s15 + $0xa4] sm:$0xf]
  %v1759 = vld [vmem:[%s15 + $0xa8] sm:$0xff]
  %v1760 = vld [vmem:[%s15 + $0xb0] sm:$0xff]
  %v1761 = vld [vmem:[%s15 + $0xb8] sm:$0xff]
  %v1762 = vld [vmem:[%s15 + $0xc0] sm:$0xf]
  %v1763 = vld [vmem:[%s15 + $0xc4] sm:$0xff]
  %v1764 = vld [vmem:[%s15 + $0xcc] sm:$0xff]
  %v1765 = vld [vmem:[%s15 + $0xd4] sm:$0xff]
  %v1766 = vld [vmem:[%s15 + $0xdc] sm:$0xf]
  %v1767 = vld [vmem:[%s15 + $0xe0] sm:$0xff]
  %v1768 = vld [vmem:[%s15 + $0xe8] sm:$0xff]
  %v1769 = vld [vmem:[%s15 + $0xf0] sm:$0xff]
  %v1770 = vld [vmem:[%s15 + $0xf8] sm:$0xf]
  %v1771 = vld [vmem:[%s15 + $0xfc] sm:$0xff]
  %v1772 = vld [vmem:[%s15 + $0x104] sm:$0xff]
  %v1773 = vld [vmem:[%s15 + $0x10c] sm:$0xff]
  %v1774 = vld [vmem:[%s15 + $0x114] sm:$0xf]
  %v1775 = vld [vmem:[%s15 + $0x118] sm:$0xff]
  %v1776 = vld [vmem:[%s15 + $0x120] sm:$0xff]
  %v1777 = vld [vmem:[%s15 + $0x128] sm:$0xff]
  %v1778 = vld [vmem:[%s15 + $0x130] sm:$0xf]
  %v1779 = vld [vmem:[%s15 + $0x134] sm:$0xff]
  %v1780 = vld [vmem:[%s15 + $0x13c] sm:$0xff]
  %v1781 = vld [vmem:[%s15 + $0x144] sm:$0xff]
  %v1782 = vld [vmem:[%s15 + $0x14c] sm:$0xf]
  %v1783 = vld [vmem:[%s15 + $0x150] sm:$0xff]
  %v1784 = vld [vmem:[%s15 + $0x158] sm:$0xff]
  %v1785 = vld [vmem:[%s15 + $0x160] sm:$0xff]
  %v1786 = vld [vmem:[%s15 + $0x168] sm:$0xf]
  %v1787 = vld [vmem:[%s15 + $0x16c] sm:$0xff]
  %v1788 = vld [vmem:[%s15 + $0x174] sm:$0xff]
  %v1789 = vld [vmem:[%s15 + $0x17c] sm:$0xff]
  %v1790 = vld [vmem:[%s15 + $0x184] sm:$0xf]
  %v1791 = vld [vmem:[%s15 + $0x188] sm:$0xff]
  %v1792 = vld [vmem:[%s15 + $0x190] sm:$0xff]
  %v1793 = vld [vmem:[%s15 + $0x198] sm:$0xff]
  %v1794 = vld [vmem:[%s15 + $0x1a0] sm:$0xf]
  %v1795 = vld [vmem:[%s15 + $0x1a4] sm:$0xff]
  %v1796 = vld [vmem:[%s15 + $0x1ac] sm:$0xff]
  %v1797 = vld [vmem:[%s15 + $0x1b4] sm:$0xff]
  %v1798 = vld [vmem:[%s15 + $0x1bc] sm:$0xf]
  %v1799 = vld [vmem:[%s15 + $0x1c0] sm:$0xff]
  %v1800 = vld [vmem:[%s15 + $0x1c8] sm:$0xff]
  %v1801 = vld [vmem:[%s15 + $0x1d0] sm:$0xff]
  %v1802 = vld [vmem:[%s15 + $0x1d8] sm:$0xf]
  %v1803 = vld [vmem:[%s15 + $0x1dc] sm:$0xff]
  %v1804 = vld [vmem:[%s15 + $0x1e4] sm:$0xff]
  %v1805 = vld [vmem:[%s15 + $0x1ec] sm:$0xff]
  %v1806 = vld [vmem:[%s15 + $0x1f4] sm:$0xf]
  %v1807 = vld [vmem:[%s15 + $0x1f8] sm:$0xff]
  %v1808 = vld [vmem:[%s15 + $0x200] sm:$0xff]
  %v1809 = vld [vmem:[%s15 + $0x208] sm:$0xff]
  %v1810 = vld [vmem:[%s15 + $0x210] sm:$0xf]
  %v1811 = vld [vmem:[%s15 + $0x214] sm:$0xff]
  %v1812 = vld [vmem:[%s15 + $0x21c] sm:$0xff]
  %v1813 = vld [vmem:[%s15 + $0x224] sm:$0xff]
  %v1814 = vld [vmem:[%s15 + $0x22c] sm:$0xf]
  %v1815 = vld [vmem:[%s15 + $0x230] sm:$0xff]
  %v1816 = vld [vmem:[%s15 + $0x238] sm:$0xff]
  %v1817 = vld [vmem:[%s15 + $0x240] sm:$0xff]
  %v1818 = vld [vmem:[%s15 + $0x248] sm:$0xf]
  %v1819 = vld [vmem:[%s15 + $0x24c] sm:$0xff]
  %v1820 = vld [vmem:[%s15 + $0x254] sm:$0xff]
  %v1821 = vld [vmem:[%s15 + $0x25c] sm:$0xff]
  %v1822 = vld [vmem:[%s15 + $0x264] sm:$0xf]
  %v1823 = vld [vmem:[%s15 + $0x268] sm:$0xff]
  %v1824 = vld [vmem:[%s15 + $0x270] sm:$0xff]
  %v1825 = vld [vmem:[%s15 + $0x278] sm:$0xff]
  %v1826 = vld [vmem:[%s15 + $0x280] sm:$0xf]
  %v1827 = vld [vmem:[%s15 + $0x284] sm:$0xff]
  %v1828 = vld [vmem:[%s15 + $0x28c] sm:$0xff]
  %v1829 = vld [vmem:[%s15 + $0x294] sm:$0xff]
  %v1830 = vld [vmem:[%s15 + $0x29c] sm:$0xf]
  %v1831 = vld [vmem:[%s15 + $0x2a0] sm:$0xff]
  %v1832 = vld [vmem:[%s15 + $0x2a8] sm:$0xff]
  %v1833 = vld [vmem:[%s15 + $0x2b0] sm:$0xff]
  %v1834 = vld [vmem:[%s15 + $0x2b8] sm:$0xf]
  %v1835 = vld [vmem:[%s15 + $0x2bc] sm:$0xff]
  %v1836 = vld [vmem:[%s15 + $0x2c4] sm:$0xff]
  %v1837 = vld [vmem:[%s15 + $0x2cc] sm:$0xff]
  %v1838 = vld [vmem:[%s15 + $0x2d4] sm:$0xf]
  %v1839 = vld [vmem:[%s15 + $0x2d8] sm:$0xff]
  %v1840 = vld [vmem:[%s15 + $0x2e0] sm:$0xff]
  %v1841 = vld [vmem:[%s15 + $0x2e8] sm:$0xff]
  %v1842 = vld [vmem:[%s15 + $0x2f0] sm:$0xf]
  %v1843 = vld [vmem:[%s15 + $0x2f4] sm:$0xff]
  %v1844 = vld [vmem:[%s15 + $0x2fc] sm:$0xff]
  %v1845 = vld [vmem:[%s15 + $0x304] sm:$0xff]
  %v1846 = vld [vmem:[%s15 + $0x30c] sm:$0xf]
  %v1847 = vld [vmem:[%s15 + $0x310] sm:$0xff]
  %v1848 = vld [vmem:[%s15 + $0x318] sm:$0xff]
  %v1849 = vld [vmem:[%s15 + $0x320] sm:$0xff]
  %v1850 = vld [vmem:[%s15 + $0x328] sm:$0xf]
  %v1851 = vld [vmem:[%s15 + $0x32c] sm:$0xff]
  %v1852 = vld [vmem:[%s15 + $0x334] sm:$0xff]
  %v1853 = vld [vmem:[%s15 + $0x33c] sm:$0xff]
  %v1854 = vld [vmem:[%s15 + $0x344] sm:$0xf]
  %v1855 = vld [vmem:[%s15 + $0x348] sm:$0xff]
  %v1856 = vld [vmem:[%s15 + $0x350] sm:$0xff]
  %v1857 = vld [vmem:[%s15 + $0x358] sm:$0xff]
  %v1858 = vld [vmem:[%s15 + $0x360] sm:$0xf]
  %v1859 = vld [vmem:[%s15 + $0x364] sm:$0xff]
  %v1860 = vld [vmem:[%s15 + $0x36c] sm:$0xff]
  %v1861 = vld [vmem:[%s15 + $0x374] sm:$0xff]
  %v1862 = vld [vmem:[%s15 + $0x37c] sm:$0xf]
  %v1863 = vld [vmem:[%s16] sm:$0xff]
  %v1865 = vperm.slane %v1863, 0
  %v1866 = vperm.slane %v1863, 1
  %v1867 = vperm.slane %v1863, 2
  %v1868 = vperm.slane %v1863, 3
  %v1869 = vperm.slane %v1863, 4
  %v1870 = vperm.slane %v1863, 5
  %v1871 = vperm.slane %v1863, 6
  %v2007 = vunpack.c.l.b16 %v1735
  %v2008 = vunpack.c.h.b16 %v1735
  %v2009 = vunpack.c.l.b16 %v1736
  %v2010 = vunpack.c.h.b16 %v1736
  %v2011 = vunpack.c.l.b16 %v1737
  %v2012 = vunpack.c.h.b16 %v1737
  %v2013 = vunpack.c.l.b16 %v1738
  %v2014 = vunpack.c.l.b16 %v1739
  %v2015 = vunpack.c.h.b16 %v1739
  %v2016 = vunpack.c.l.b16 %v1740
  %v2017 = vunpack.c.h.b16 %v1740
  %v2018 = vunpack.c.l.b16 %v1741
  %v2019 = vunpack.c.h.b16 %v1741
  %v2020 = vunpack.c.l.b16 %v1742
  %v2021 = vunpack.c.l.b16 %v1743
  %v2022 = vunpack.c.h.b16 %v1743
  %v2023 = vunpack.c.l.b16 %v1744
  %v2024 = vunpack.c.h.b16 %v1744
  %v2025 = vunpack.c.l.b16 %v1745
  %v2026 = vunpack.c.h.b16 %v1745
  %v2027 = vunpack.c.l.b16 %v1746
  %v2028 = vunpack.c.l.b16 %v1747
  %v2029 = vunpack.c.h.b16 %v1747
  %v2030 = vunpack.c.l.b16 %v1748
  %v2031 = vunpack.c.h.b16 %v1748
  %v2032 = vunpack.c.l.b16 %v1749
  %v2033 = vunpack.c.h.b16 %v1749
  %v2034 = vunpack.c.l.b16 %v1750
  %v2035 = vunpack.c.l.b16 %v1751
  %v2036 = vunpack.c.h.b16 %v1751
  %v2037 = vunpack.c.l.b16 %v1752
  %v2038 = vunpack.c.h.b16 %v1752
  %v2039 = vunpack.c.l.b16 %v1753
  %v2040 = vunpack.c.h.b16 %v1753
  %v2041 = vunpack.c.l.b16 %v1754
  %v2042 = vunpack.c.l.b16 %v1755
  %v2043 = vunpack.c.h.b16 %v1755
  %v2044 = vunpack.c.l.b16 %v1756
  %v2045 = vunpack.c.h.b16 %v1756
  %v2046 = vunpack.c.l.b16 %v1757
  %v2047 = vunpack.c.h.b16 %v1757
  %v2048 = vunpack.c.l.b16 %v1758
  %v2049 = vunpack.c.l.b16 %v1759
  %v2050 = vunpack.c.h.b16 %v1759
  %v2051 = vunpack.c.l.b16 %v1760
  %v2052 = vunpack.c.h.b16 %v1760
  %v2053 = vunpack.c.l.b16 %v1761
  %v2054 = vunpack.c.h.b16 %v1761
  %v2055 = vunpack.c.l.b16 %v1762
  %v2056 = vunpack.c.l.b16 %v1763
  %v2057 = vunpack.c.h.b16 %v1763
  %v2058 = vunpack.c.l.b16 %v1764
  %v2059 = vunpack.c.h.b16 %v1764
  %v2060 = vunpack.c.l.b16 %v1765
  %v2061 = vunpack.c.h.b16 %v1765
  %v2062 = vunpack.c.l.b16 %v1766
  %v2063 = vunpack.c.l.b16 %v1767
  %v2064 = vunpack.c.h.b16 %v1767
  %v2065 = vunpack.c.l.b16 %v1768
  %v2066 = vunpack.c.h.b16 %v1768
  %v2067 = vunpack.c.l.b16 %v1769
  %v2068 = vunpack.c.h.b16 %v1769
  %v2069 = vunpack.c.l.b16 %v1770
  %v2070 = vunpack.c.l.b16 %v1771
  %v2071 = vunpack.c.h.b16 %v1771
  %v2072 = vunpack.c.l.b16 %v1772
  %v2073 = vunpack.c.h.b16 %v1772
  %v2074 = vunpack.c.l.b16 %v1773
  %v2075 = vunpack.c.h.b16 %v1773
  %v2076 = vunpack.c.l.b16 %v1774
  %v2077 = vunpack.c.l.b16 %v1775
  %v2078 = vunpack.c.h.b16 %v1775
  %v2079 = vunpack.c.l.b16 %v1776
  %v2080 = vunpack.c.h.b16 %v1776
  %v2081 = vunpack.c.l.b16 %v1777
  %v2082 = vunpack.c.h.b16 %v1777
  %v2083 = vunpack.c.l.b16 %v1778
  %v2084 = vunpack.c.l.b16 %v1779
  %v2085 = vunpack.c.h.b16 %v1779
  %v2086 = vunpack.c.l.b16 %v1780
  %v2087 = vunpack.c.h.b16 %v1780
  %v2088 = vunpack.c.l.b16 %v1781
  %v2089 = vunpack.c.h.b16 %v1781
  %v2090 = vunpack.c.l.b16 %v1782
  %v2091 = vunpack.c.l.b16 %v1783
  %v2092 = vunpack.c.h.b16 %v1783
  %v2093 = vunpack.c.l.b16 %v1784
  %v2094 = vunpack.c.h.b16 %v1784
  %v2095 = vunpack.c.l.b16 %v1785
  %v2096 = vunpack.c.h.b16 %v1785
  %v2097 = vunpack.c.l.b16 %v1786
  %v2098 = vunpack.c.l.b16 %v1787
  %v2099 = vunpack.c.h.b16 %v1787
  %v2100 = vunpack.c.l.b16 %v1788
  %v2101 = vunpack.c.h.b16 %v1788
  %v2102 = vunpack.c.l.b16 %v1789
  %v2103 = vunpack.c.h.b16 %v1789
  %v2104 = vunpack.c.l.b16 %v1790
  %v2105 = vunpack.c.l.b16 %v1791
  %v2106 = vunpack.c.h.b16 %v1791
  %v2107 = vunpack.c.l.b16 %v1792
  %v2108 = vunpack.c.h.b16 %v1792
  %v2109 = vunpack.c.l.b16 %v1793
  %v2110 = vunpack.c.h.b16 %v1793
  %v2111 = vunpack.c.l.b16 %v1794
  %v2112 = vunpack.c.l.b16 %v1795
  %v2113 = vunpack.c.h.b16 %v1795
  %v2114 = vunpack.c.l.b16 %v1796
  %v2115 = vunpack.c.h.b16 %v1796
  %v2116 = vunpack.c.l.b16 %v1797
  %v2117 = vunpack.c.h.b16 %v1797
  %v2118 = vunpack.c.l.b16 %v1798
  %v2119 = vunpack.c.l.b16 %v1799
  %v2120 = vunpack.c.h.b16 %v1799
  %v2121 = vunpack.c.l.b16 %v1800
  %v2122 = vunpack.c.h.b16 %v1800
  %v2123 = vunpack.c.l.b16 %v1801
  %v2124 = vunpack.c.h.b16 %v1801
  %v2125 = vunpack.c.l.b16 %v1802
  %v2126 = vunpack.c.l.b16 %v1803
  %v2127 = vunpack.c.h.b16 %v1803
  %v2128 = vunpack.c.l.b16 %v1804
  %v2129 = vunpack.c.h.b16 %v1804
  %v2130 = vunpack.c.l.b16 %v1805
  %v2131 = vunpack.c.h.b16 %v1805
  %v2132 = vunpack.c.l.b16 %v1806
  %v2133 = vunpack.c.l.b16 %v1807
  %v2134 = vunpack.c.h.b16 %v1807
  %v2135 = vunpack.c.l.b16 %v1808
  %v2136 = vunpack.c.h.b16 %v1808
  %v2137 = vunpack.c.l.b16 %v1809
  %v2138 = vunpack.c.h.b16 %v1809
  %v2139 = vunpack.c.l.b16 %v1810
  %v2140 = vunpack.c.l.b16 %v1811
  %v2141 = vunpack.c.h.b16 %v1811
  %v2142 = vunpack.c.l.b16 %v1812
  %v2143 = vunpack.c.h.b16 %v1812
  %v2144 = vunpack.c.l.b16 %v1813
  %v2145 = vunpack.c.h.b16 %v1813
  %v2146 = vunpack.c.l.b16 %v1814
  %v2147 = vunpack.c.l.b16 %v1815
  %v2148 = vunpack.c.h.b16 %v1815
  %v2149 = vunpack.c.l.b16 %v1816
  %v2150 = vunpack.c.h.b16 %v1816
  %v2151 = vunpack.c.l.b16 %v1817
  %v2152 = vunpack.c.h.b16 %v1817
  %v2153 = vunpack.c.l.b16 %v1818
  %v2154 = vunpack.c.l.b16 %v1819
  %v2155 = vunpack.c.h.b16 %v1819
  %v2156 = vunpack.c.l.b16 %v1820
  %v2157 = vunpack.c.h.b16 %v1820
  %v2158 = vunpack.c.l.b16 %v1821
  %v2159 = vunpack.c.h.b16 %v1821
  %v2160 = vunpack.c.l.b16 %v1822
  %v2161 = vunpack.c.l.b16 %v1823
  %v2162 = vunpack.c.h.b16 %v1823
  %v2163 = vunpack.c.l.b16 %v1824
  %v2164 = vunpack.c.h.b16 %v1824
  %v2165 = vunpack.c.l.b16 %v1825
  %v2166 = vunpack.c.h.b16 %v1825
  %v2167 = vunpack.c.l.b16 %v1826
  %v2168 = vunpack.c.l.b16 %v1827
  %v2169 = vunpack.c.h.b16 %v1827
  %v2170 = vunpack.c.l.b16 %v1828
  %v2171 = vunpack.c.h.b16 %v1828
  %v2172 = vunpack.c.l.b16 %v1829
  %v2173 = vunpack.c.h.b16 %v1829
  %v2174 = vunpack.c.l.b16 %v1830
  %v2175 = vunpack.c.l.b16 %v1831
  %v2176 = vunpack.c.h.b16 %v1831
  %v2177 = vunpack.c.l.b16 %v1832
  %v2178 = vunpack.c.h.b16 %v1832
  %v2179 = vunpack.c.l.b16 %v1833
  %v2180 = vunpack.c.h.b16 %v1833
  %v2181 = vunpack.c.l.b16 %v1834
  %v2182 = vunpack.c.l.b16 %v1835
  %v2183 = vunpack.c.h.b16 %v1835
  %v2184 = vunpack.c.l.b16 %v1836
  %v2185 = vunpack.c.h.b16 %v1836
  %v2186 = vunpack.c.l.b16 %v1837
  %v2187 = vunpack.c.h.b16 %v1837
  %v2188 = vunpack.c.l.b16 %v1838
  %v2189 = vunpack.c.l.b16 %v1839
  %v2190 = vunpack.c.h.b16 %v1839
  %v2191 = vunpack.c.l.b16 %v1840
  %v2192 = vunpack.c.h.b16 %v1840
  %v2193 = vunpack.c.l.b16 %v1841
  %v2194 = vunpack.c.h.b16 %v1841
  %v2195 = vunpack.c.l.b16 %v1842
  %v2196 = vunpack.c.l.b16 %v1843
  %v2197 = vunpack.c.h.b16 %v1843
  %v2198 = vunpack.c.l.b16 %v1844
  %v2199 = vunpack.c.h.b16 %v1844
  %v2200 = vunpack.c.l.b16 %v1845
  %v2201 = vunpack.c.h.b16 %v1845
  %v2202 = vunpack.c.l.b16 %v1846
  %v2203 = vunpack.c.l.b16 %v1847
  %v2204 = vunpack.c.h.b16 %v1847
  %v2205 = vunpack.c.l.b16 %v1848
  %v2206 = vunpack.c.h.b16 %v1848
  %v2207 = vunpack.c.l.b16 %v1849
  %v2208 = vunpack.c.h.b16 %v1849
  %v2209 = vunpack.c.l.b16 %v1850
  %v2210 = vunpack.c.l.b16 %v1851
  %v2211 = vunpack.c.h.b16 %v1851
  %v2212 = vunpack.c.l.b16 %v1852
  %v2213 = vunpack.c.h.b16 %v1852
  %v2214 = vunpack.c.l.b16 %v1853
  %v2215 = vunpack.c.h.b16 %v1853
  %v2216 = vunpack.c.l.b16 %v1854
  %v2217 = vunpack.c.l.b16 %v1855
  %v2218 = vunpack.c.h.b16 %v1855
  %v2219 = vunpack.c.l.b16 %v1856
  %v2220 = vunpack.c.h.b16 %v1856
  %v2221 = vunpack.c.l.b16 %v1857
  %v2222 = vunpack.c.h.b16 %v1857
  %v2223 = vunpack.c.l.b16 %v1858
  %v2224 = vunpack.c.l.b16 %v1859
  %v2225 = vunpack.c.h.b16 %v1859
  %v2226 = vunpack.c.l.b16 %v1860
  %v2227 = vunpack.c.h.b16 %v1860
  %v2228 = vunpack.c.l.b16 %v1861
  %v2229 = vunpack.c.h.b16 %v1861
  %v2230 = vunpack.c.l.b16 %v1862
  %v2231 = vpack.c.b16 %v2014, %v2007
  %v2232 = vpack.c.b16 %v2015, %v2008
  %v2233 = vpack.c.b16 %v2016, %v2009
  %v2234 = vpack.c.b16 %v2017, %v2010
  %v2235 = vpack.c.b16 %v2018, %v2011
  %v2236 = vpack.c.b16 %v2019, %v2012
  %v2237 = vpack.c.b16 %v2020, %v2013
  %v2238 = vpack.c.b16 %v2028, %v2021
  %v2239 = vpack.c.b16 %v2029, %v2022
  %v2240 = vpack.c.b16 %v2030, %v2023
  %v2241 = vpack.c.b16 %v2031, %v2024
  %v2242 = vpack.c.b16 %v2032, %v2025
  %v2243 = vpack.c.b16 %v2033, %v2026
  %v2244 = vpack.c.b16 %v2034, %v2027
  %v2245 = vpack.c.b16 %v2042, %v2035
  %v2246 = vpack.c.b16 %v2043, %v2036
  %v2247 = vpack.c.b16 %v2044, %v2037
  %v2248 = vpack.c.b16 %v2045, %v2038
  %v2249 = vpack.c.b16 %v2046, %v2039
  %v2250 = vpack.c.b16 %v2047, %v2040
  %v2251 = vpack.c.b16 %v2048, %v2041
  %v2252 = vpack.c.b16 %v2056, %v2049
  %v2253 = vpack.c.b16 %v2057, %v2050
  %v2254 = vpack.c.b16 %v2058, %v2051
  %v2255 = vpack.c.b16 %v2059, %v2052
  %v2256 = vpack.c.b16 %v2060, %v2053
  %v2257 = vpack.c.b16 %v2061, %v2054
  %v2258 = vpack.c.b16 %v2062, %v2055
  %v2259 = vpack.c.b16 %v2070, %v2063
  %v2260 = vpack.c.b16 %v2071, %v2064
  %v2261 = vpack.c.b16 %v2072, %v2065
  %v2262 = vpack.c.b16 %v2073, %v2066
  %v2263 = vpack.c.b16 %v2074, %v2067
  %v2264 = vpack.c.b16 %v2075, %v2068
  %v2265 = vpack.c.b16 %v2076, %v2069
  %v2266 = vpack.c.b16 %v2084, %v2077
  %v2267 = vpack.c.b16 %v2085, %v2078
  %v2268 = vpack.c.b16 %v2086, %v2079
  %v2269 = vpack.c.b16 %v2087, %v2080
  %v2270 = vpack.c.b16 %v2088, %v2081
  %v2271 = vpack.c.b16 %v2089, %v2082
  %v2272 = vpack.c.b16 %v2090, %v2083
  %v2273 = vpack.c.b16 %v2098, %v2091
  %v2274 = vpack.c.b16 %v2099, %v2092
  %v2275 = vpack.c.b16 %v2100, %v2093
  %v2276 = vpack.c.b16 %v2101, %v2094
  %v2277 = vpack.c.b16 %v2102, %v2095
  %v2278 = vpack.c.b16 %v2103, %v2096
  %v2279 = vpack.c.b16 %v2104, %v2097
  %v2280 = vpack.c.b16 %v2112, %v2105
  %v2281 = vpack.c.b16 %v2113, %v2106
  %v2282 = vpack.c.b16 %v2114, %v2107
  %v2283 = vpack.c.b16 %v2115, %v2108
  %v2284 = vpack.c.b16 %v2116, %v2109
  %v2285 = vpack.c.b16 %v2117, %v2110
  %v2286 = vpack.c.b16 %v2118, %v2111
  %v2287 = vpack.c.b16 %v2126, %v2119
  %v2288 = vpack.c.b16 %v2127, %v2120
  %v2289 = vpack.c.b16 %v2128, %v2121
  %v2290 = vpack.c.b16 %v2129, %v2122
  %v2291 = vpack.c.b16 %v2130, %v2123
  %v2292 = vpack.c.b16 %v2131, %v2124
  %v2293 = vpack.c.b16 %v2132, %v2125
  %v2294 = vpack.c.b16 %v2140, %v2133
  %v2295 = vpack.c.b16 %v2141, %v2134
  %v2296 = vpack.c.b16 %v2142, %v2135
  %v2297 = vpack.c.b16 %v2143, %v2136
  %v2298 = vpack.c.b16 %v2144, %v2137
  %v2299 = vpack.c.b16 %v2145, %v2138
  %v2300 = vpack.c.b16 %v2146, %v2139
  %v2301 = vpack.c.b16 %v2154, %v2147
  %v2302 = vpack.c.b16 %v2155, %v2148
  %v2303 = vpack.c.b16 %v2156, %v2149
  %v2304 = vpack.c.b16 %v2157, %v2150
  %v2305 = vpack.c.b16 %v2158, %v2151
  %v2306 = vpack.c.b16 %v2159, %v2152
  %v2307 = vpack.c.b16 %v2160, %v2153
  %v2308 = vpack.c.b16 %v2168, %v2161
  %v2309 = vpack.c.b16 %v2169, %v2162
  %v2310 = vpack.c.b16 %v2170, %v2163
  %v2311 = vpack.c.b16 %v2171, %v2164
  %v2312 = vpack.c.b16 %v2172, %v2165
  %v2313 = vpack.c.b16 %v2173, %v2166
  %v2314 = vpack.c.b16 %v2174, %v2167
  %v2315 = vpack.c.b16 %v2182, %v2175
  %v2316 = vpack.c.b16 %v2183, %v2176
  %v2317 = vpack.c.b16 %v2184, %v2177
  %v2318 = vpack.c.b16 %v2185, %v2178
  %v2319 = vpack.c.b16 %v2186, %v2179
  %v2320 = vpack.c.b16 %v2187, %v2180
  %v2321 = vpack.c.b16 %v2188, %v2181
  %v2322 = vpack.c.b16 %v2196, %v2189
  %v2323 = vpack.c.b16 %v2197, %v2190
  %v2324 = vpack.c.b16 %v2198, %v2191
  %v2325 = vpack.c.b16 %v2199, %v2192
  %v2326 = vpack.c.b16 %v2200, %v2193
  %v2327 = vpack.c.b16 %v2201, %v2194
  %v2328 = vpack.c.b16 %v2202, %v2195
  %v2329 = vpack.c.b16 %v2210, %v2203
  %v2330 = vpack.c.b16 %v2211, %v2204
  %v2331 = vpack.c.b16 %v2212, %v2205
  %v2332 = vpack.c.b16 %v2213, %v2206
  %v2333 = vpack.c.b16 %v2214, %v2207
  %v2334 = vpack.c.b16 %v2215, %v2208
  %v2335 = vpack.c.b16 %v2216, %v2209
  %v2336 = vpack.c.b16 %v2224, %v2217
  %v2337 = vpack.c.b16 %v2225, %v2218
  %v2338 = vpack.c.b16 %v2226, %v2219
  %v2339 = vpack.c.b16 %v2227, %v2220
  %v2340 = vpack.c.b16 %v2228, %v2221
  %v2341 = vpack.c.b16 %v2229, %v2222
  %v2342 = vpack.c.b16 %v2230, %v2223
  %2455 = vmatpush.bf16.msra.mxu0 %v2280
  %2456 = vmatpush.bf16.msra.mxu0 %v2273
  %2457 = vmatpush.bf16.msra.mxu0 %v2266
  %2458 = vmatpush.bf16.msra.mxu0 %v2259
  %2459 = vmatpush.bf16.msra.mxu0 %v2252
  %2460 = vmatpush.bf16.msra.mxu0 %v2245
  %2461 = vmatpush.bf16.msra.mxu0 %v2238
  %2462 = vmatpush.bf16.msra.mxu0 %v2231
  %2463 = vmatmul.bf16.gmra.mxu0 %v1733
  %v2464 = vpop.f32.mrf.mxu0
  %v2465 = vadd.f32 %v1865, %v2464
  %v2466 = vpop.f32.mrf.mxu0
  %v2467 = vadd.f32 %v1865, %v2466
  %2468 = vdwg.mxu0
  %2469 = vmatpush.bf16.msra.mxu0 %v2336
  %2470 = vmatpush.bf16.msra.mxu0 %v2329
  %2471 = vmatpush.bf16.msra.mxu0 %v2322
  %2472 = vmatpush.bf16.msra.mxu0 %v2315
  %2473 = vmatpush.bf16.msra.mxu0 %v2308
  %2474 = vmatpush.bf16.msra.mxu0 %v2301
  %2475 = vmatpush.bf16.msra.mxu0 %v2294
  %2476 = vmatpush.bf16.msra.mxu0 %v2287
  %2477 = vmatmul.bf16.gmra.mxu0 %v1734
  %v2478 = vpop.f32.mrf.mxu0
  %v2479 = vadd.f32 %v2465, %v2478
  %v2480 = vpop.f32.mrf.mxu0
  %v2481 = vadd.f32 %v2467, %v2480
  %2482 = vdwg.mxu0
  %2483 = vmatpush.bf16.msra.mxu0 %v2281
  %2484 = vmatpush.bf16.msra.mxu0 %v2274
  %2485 = vmatpush.bf16.msra.mxu0 %v2267
  %2486 = vmatpush.bf16.msra.mxu0 %v2260
  %2487 = vmatpush.bf16.msra.mxu0 %v2253
  %2488 = vmatpush.bf16.msra.mxu0 %v2246
  %2489 = vmatpush.bf16.msra.mxu0 %v2239
  %2490 = vmatpush.bf16.msra.mxu0 %v2232
  %2491 = vmatmul.bf16.gmra.mxu0 %v1733
  %v2492 = vpop.f32.mrf.mxu0
  %v2493 = vadd.f32 %v1866, %v2492
  %v2494 = vpop.f32.mrf.mxu0
  %v2495 = vadd.f32 %v1866, %v2494
  %2496 = vdwg.mxu0
  %2497 = vmatpush.bf16.msra.mxu0 %v2337
  %2498 = vmatpush.bf16.msra.mxu0 %v2330
  %2499 = vmatpush.bf16.msra.mxu0 %v2323
  %2500 = vmatpush.bf16.msra.mxu0 %v2316
  %2501 = vmatpush.bf16.msra.mxu0 %v2309
  %2502 = vmatpush.bf16.msra.mxu0 %v2302
  %2503 = vmatpush.bf16.msra.mxu0 %v2295
  %2504 = vmatpush.bf16.msra.mxu0 %v2288
  %2505 = vmatmul.bf16.gmra.mxu0 %v1734
  %v2506 = vpop.f32.mrf.mxu0
  %v2507 = vadd.f32 %v2493, %v2506
  %v2508 = vpop.f32.mrf.mxu0
  %v2509 = vadd.f32 %v2495, %v2508
  %2510 = vdwg.mxu0
  %2511 = vmatpush.bf16.msra.mxu0 %v2282
  %2512 = vmatpush.bf16.msra.mxu0 %v2275
  %2513 = vmatpush.bf16.msra.mxu0 %v2268
  %2514 = vmatpush.bf16.msra.mxu0 %v2261
  %2515 = vmatpush.bf16.msra.mxu0 %v2254
  %2516 = vmatpush.bf16.msra.mxu0 %v2247
  %2517 = vmatpush.bf16.msra.mxu0 %v2240
  %2518 = vmatpush.bf16.msra.mxu0 %v2233
  %2519 = vmatmul.bf16.gmra.mxu0 %v1733
  %v2520 = vpop.f32.mrf.mxu0
  %v2521 = vadd.f32 %v1867, %v2520
  %v2522 = vpop.f32.mrf.mxu0
  %v2523 = vadd.f32 %v1867, %v2522
  %2524 = vdwg.mxu0
  %2525 = vmatpush.bf16.msra.mxu0 %v2338
  %2526 = vmatpush.bf16.msra.mxu0 %v2331
  %2527 = vmatpush.bf16.msra.mxu0 %v2324
  %2528 = vmatpush.bf16.msra.mxu0 %v2317
  %2529 = vmatpush.bf16.msra.mxu0 %v2310
  %2530 = vmatpush.bf16.msra.mxu0 %v2303
  %2531 = vmatpush.bf16.msra.mxu0 %v2296
  %2532 = vmatpush.bf16.msra.mxu0 %v2289
  %2533 = vmatmul.bf16.gmra.mxu0 %v1734
  %v2534 = vpop.f32.mrf.mxu0
  %v2535 = vadd.f32 %v2521, %v2534
  %v2536 = vpop.f32.mrf.mxu0
  %v2537 = vadd.f32 %v2523, %v2536
  %2538 = vdwg.mxu0
  %2539 = vmatpush.bf16.msra.mxu0 %v2283
  %2540 = vmatpush.bf16.msra.mxu0 %v2276
  %2541 = vmatpush.bf16.msra.mxu0 %v2269
  %2542 = vmatpush.bf16.msra.mxu0 %v2262
  %2543 = vmatpush.bf16.msra.mxu0 %v2255
  %2544 = vmatpush.bf16.msra.mxu0 %v2248
  %2545 = vmatpush.bf16.msra.mxu0 %v2241
  %2546 = vmatpush.bf16.msra.mxu0 %v2234
  %2547 = vmatmul.bf16.gmra.mxu0 %v1733
  %v2548 = vpop.f32.mrf.mxu0
  %v2549 = vadd.f32 %v1868, %v2548
  %v2550 = vpop.f32.mrf.mxu0
  %v2551 = vadd.f32 %v1868, %v2550
  %2552 = vdwg.mxu0
  %2553 = vmatpush.bf16.msra.mxu0 %v2339
  %2554 = vmatpush.bf16.msra.mxu0 %v2332
  %2555 = vmatpush.bf16.msra.mxu0 %v2325
  %2556 = vmatpush.bf16.msra.mxu0 %v2318
  %2557 = vmatpush.bf16.msra.mxu0 %v2311
  %2558 = vmatpush.bf16.msra.mxu0 %v2304
  %2559 = vmatpush.bf16.msra.mxu0 %v2297
  %2560 = vmatpush.bf16.msra.mxu0 %v2290
  %2561 = vmatmul.bf16.gmra.mxu0 %v1734
  %v2562 = vpop.f32.mrf.mxu0
  %v2563 = vadd.f32 %v2549, %v2562
  %v2564 = vpop.f32.mrf.mxu0
  %v2565 = vadd.f32 %v2551, %v2564
  %2566 = vdwg.mxu0
  %2567 = vmatpush.bf16.msra.mxu0 %v2284
  %2568 = vmatpush.bf16.msra.mxu0 %v2277
  %2569 = vmatpush.bf16.msra.mxu0 %v2270
  %2570 = vmatpush.bf16.msra.mxu0 %v2263
  %2571 = vmatpush.bf16.msra.mxu0 %v2256
  %2572 = vmatpush.bf16.msra.mxu0 %v2249
  %2573 = vmatpush.bf16.msra.mxu0 %v2242
  %2574 = vmatpush.bf16.msra.mxu0 %v2235
  %2575 = vmatmul.bf16.gmra.mxu0 %v1733
  %v2576 = vpop.f32.mrf.mxu0
  %v2577 = vadd.f32 %v1869, %v2576
  %v2578 = vpop.f32.mrf.mxu0
  %v2579 = vadd.f32 %v1869, %v2578
  %2580 = vdwg.mxu0
  %2581 = vmatpush.bf16.msra.mxu0 %v2340
  %2582 = vmatpush.bf16.msra.mxu0 %v2333
  %2583 = vmatpush.bf16.msra.mxu0 %v2326
  %2584 = vmatpush.bf16.msra.mxu0 %v2319
  %2585 = vmatpush.bf16.msra.mxu0 %v2312
  %2586 = vmatpush.bf16.msra.mxu0 %v2305
  %2587 = vmatpush.bf16.msra.mxu0 %v2298
  %2588 = vmatpush.bf16.msra.mxu0 %v2291
  %2589 = vmatmul.bf16.gmra.mxu0 %v1734
  %v2590 = vpop.f32.mrf.mxu0
  %v2591 = vadd.f32 %v2577, %v2590
  %v2592 = vpop.f32.mrf.mxu0
  %v2593 = vadd.f32 %v2579, %v2592
  %2594 = vdwg.mxu0
  %2595 = vmatpush.bf16.msra.mxu0 %v2285
  %2596 = vmatpush.bf16.msra.mxu0 %v2278
  %2597 = vmatpush.bf16.msra.mxu0 %v2271
  %2598 = vmatpush.bf16.msra.mxu0 %v2264
  %2599 = vmatpush.bf16.msra.mxu0 %v2257
  %2600 = vmatpush.bf16.msra.mxu0 %v2250
  %2601 = vmatpush.bf16.msra.mxu0 %v2243
  %2602 = vmatpush.bf16.msra.mxu0 %v2236
  %2603 = vmatmul.bf16.gmra.mxu0 %v1733
  %v2604 = vpop.f32.mrf.mxu0
  %v2605 = vadd.f32 %v1870, %v2604
  %v2606 = vpop.f32.mrf.mxu0
  %v2607 = vadd.f32 %v1870, %v2606
  %2608 = vdwg.mxu0
  %2609 = vmatpush.bf16.msra.mxu0 %v2341
  %2610 = vmatpush.bf16.msra.mxu0 %v2334
  %2611 = vmatpush.bf16.msra.mxu0 %v2327
  %2612 = vmatpush.bf16.msra.mxu0 %v2320
  %2613 = vmatpush.bf16.msra.mxu0 %v2313
  %2614 = vmatpush.bf16.msra.mxu0 %v2306
  %2615 = vmatpush.bf16.msra.mxu0 %v2299
  %2616 = vmatpush.bf16.msra.mxu0 %v2292
  %2617 = vmatmul.bf16.gmra.mxu0 %v1734
  %v2618 = vpop.f32.mrf.mxu0
  %v2619 = vadd.f32 %v2605, %v2618
  %v2620 = vpop.f32.mrf.mxu0
  %v2621 = vadd.f32 %v2607, %v2620
  %2622 = vdwg.mxu0
  %2623 = vmatpush.bf16.msra.mxu0 %v2286
  %2624 = vmatpush.bf16.msra.mxu0 %v2279
  %2625 = vmatpush.bf16.msra.mxu0 %v2272
  %2626 = vmatpush.bf16.msra.mxu0 %v2265
  %2627 = vmatpush.bf16.msra.mxu0 %v2258
  %2628 = vmatpush.bf16.msra.mxu0 %v2251
  %2629 = vmatpush.bf16.msra.mxu0 %v2244
  %2630 = vmatpush.bf16.msra.mxu0 %v2237
  %2631 = vmatmul.bf16.gmra.mxu0 %v1733
  %v2632 = vpop.f32.mrf.mxu0
  %v2633 = vadd.f32 %v1871, %v2632
  %v2634 = vpop.f32.mrf.mxu0
  %v2635 = vadd.f32 %v1871, %v2634
  %2636 = vdwg.mxu0
  %2637 = vmatpush.bf16.msra.mxu0 %v2342
  %2638 = vmatpush.bf16.msra.mxu0 %v2335
  %2639 = vmatpush.bf16.msra.mxu0 %v2328
  %2640 = vmatpush.bf16.msra.mxu0 %v2321
  %2641 = vmatpush.bf16.msra.mxu0 %v2314
  %2642 = vmatpush.bf16.msra.mxu0 %v2307
  %2643 = vmatpush.bf16.msra.mxu0 %v2300
  %2644 = vmatpush.bf16.msra.mxu0 %v2293
  %2645 = vmatmul.bf16.gmra.mxu0 %v1734
  %v2646 = vpop.f32.mrf.mxu0
  %v2647 = vadd.f32 %v2633, %v2646
  %v2648 = vpop.f32.mrf.mxu0
  %v2649 = vadd.f32 %v2635, %v2648
  %2650 = vdwg.mxu0
  %v2651 = vsub.f32 0.0, %v2479
  %v2652 = vsub.f32 0.0, %v2507
  %v2653 = vsub.f32 0.0, %v2535
  %v2654 = vsub.f32 0.0, %v2563
  %v2655 = vsub.f32 0.0, %v2591
  %v2656 = vsub.f32 0.0, %v2619
  %v2657 = vsub.f32 0.0, %v2647
  %v2658 = vsub.f32 0.0, %v2481
  %v2659 = vsub.f32 0.0, %v2509
  %v2660 = vsub.f32 0.0, %v2537
  %v2661 = vsub.f32 0.0, %v2565
  %v2662 = vsub.f32 0.0, %v2593
  %v2663 = vsub.f32 0.0, %v2621
  %v2664 = vsub.f32 0.0, %v2649
  %v2665 = vmul.f32 %v2651, 1.442695
  %v2666 = vpow.pop %v2665
  %v2667 = vmul.f32 %v2652, 1.442695
  %v2668 = vpow.pop %v2667
  %v2669 = vmul.f32 %v2653, 1.442695
  %v2670 = vpow.pop %v2669
  %v2671 = vmul.f32 %v2654, 1.442695
  %v2672 = vpow.pop %v2671
  %v2673 = vmul.f32 %v2655, 1.442695
  %v2674 = vpow.pop %v2673
  %v2675 = vmul.f32 %v2656, 1.442695
  %v2676 = vpow.pop %v2675
  %v2677 = vmul.f32 %v2657, 1.442695
  %v2678 = vpow.pop %v2677
  %v2679 = vmul.f32 %v2658, 1.442695
  %v2680 = vpow.pop %v2679
  %v2681 = vmul.f32 %v2659, 1.442695
  %v2682 = vpow.pop %v2681
  %v2683 = vmul.f32 %v2660, 1.442695
  %v2684 = vpow.pop %v2683
  %v2685 = vmul.f32 %v2661, 1.442695
  %v2686 = vpow.pop %v2685
  %v2687 = vmul.f32 %v2662, 1.442695
  %v2688 = vpow.pop %v2687
  %v2689 = vmul.f32 %v2663, 1.442695
  %v2690 = vpow.pop %v2689
  %v2691 = vmul.f32 %v2664, 1.442695
  %v2692 = vpow.pop %v2691
  %v2693 = vadd.f32 %v2666, 1.0
  %v2694 = vadd.f32 %v2668, 1.0
  %v2695 = vadd.f32 %v2670, 1.0
  %v2696 = vadd.f32 %v2672, 1.0
  %v2697 = vadd.f32 %v2674, 1.0
  %v2698 = vadd.f32 %v2676, 1.0
  %v2699 = vadd.f32 %v2678, 1.0
  %v2700 = vadd.f32 %v2680, 1.0
  %v2701 = vadd.f32 %v2682, 1.0
  %v2702 = vadd.f32 %v2684, 1.0
  %v2703 = vadd.f32 %v2686, 1.0
  %v2704 = vadd.f32 %v2688, 1.0
  %v2705 = vadd.f32 %v2690, 1.0
  %v2706 = vadd.f32 %v2692, 1.0
  %v2707 = vrcp.pop %v2693
  %v2708 = vmul.f32 %v2693, %v2707
  %v2709 = vsub.f32 1.0, %v2708
  %v2710 = vmul.f32 %v2707, %v2709
  %v2711 = vadd.f32 %v2707, %v2710
  %vm2712 = vweird.f32 %v2693
  %vm2713 = vweird.f32 %v2707
  %vm2714 = vmor %vm2712, %vm2713
  %v2715 = vsel %vm2714, %v2707, %v2711
  %v2716 = vand.u32 2147483647, %v2693
  %vm2717 = vcmp.eq.f32.partialorder %v2716, 8.507059e+37
  %v2718 = vand.u32 %v2693, 2147483648
  %v2719 = vor.u32 1.1754944e-38, %v2718
  %v2720 = vsel %vm2717, %v2719, %v2715
  %v2721 = vmul.f32 1.0, %v2720
  %v2722 = vrcp.pop %v2694
  %v2723 = vmul.f32 %v2694, %v2722
  %v2724 = vsub.f32 1.0, %v2723
  %v2725 = vmul.f32 %v2722, %v2724
  %v2726 = vadd.f32 %v2722, %v2725
  %vm2727 = vweird.f32 %v2694
  %vm2728 = vweird.f32 %v2722
  %vm2729 = vmor %vm2727, %vm2728
  %v2730 = vsel %vm2729, %v2722, %v2726
  %v2731 = vand.u32 2147483647, %v2694
  %vm2732 = vcmp.eq.f32.partialorder %v2731, 8.507059e+37
  %v2733 = vand.u32 %v2694, 2147483648
  %v2734 = vor.u32 1.1754944e-38, %v2733
  %v2735 = vsel %vm2732, %v2734, %v2730
  %v2736 = vmul.f32 1.0, %v2735
  %v2737 = vrcp.pop %v2695
  %v2738 = vmul.f32 %v2695, %v2737
  %v2739 = vsub.f32 1.0, %v2738
  %v2740 = vmul.f32 %v2737, %v2739
  %v2741 = vadd.f32 %v2737, %v2740
  %vm2742 = vweird.f32 %v2695
  %vm2743 = vweird.f32 %v2737
  %vm2744 = vmor %vm2742, %vm2743
  %v2745 = vsel %vm2744, %v2737, %v2741
  %v2746 = vand.u32 2147483647, %v2695
  %vm2747 = vcmp.eq.f32.partialorder %v2746, 8.507059e+37
  %v2748 = vand.u32 %v2695, 2147483648
  %v2749 = vor.u32 1.1754944e-38, %v2748
  %v2750 = vsel %vm2747, %v2749, %v2745
  %v2751 = vmul.f32 1.0, %v2750
  %v2752 = vrcp.pop %v2696
  %v2753 = vmul.f32 %v2696, %v2752
  %v2754 = vsub.f32 1.0, %v2753
  %v2755 = vmul.f32 %v2752, %v2754
  %v2756 = vadd.f32 %v2752, %v2755
  %vm2757 = vweird.f32 %v2696
  %vm2758 = vweird.f32 %v2752
  %vm2759 = vmor %vm2757, %vm2758
  %v2760 = vsel %vm2759, %v2752, %v2756
  %v2761 = vand.u32 2147483647, %v2696
  %vm2762 = vcmp.eq.f32.partialorder %v2761, 8.507059e+37
  %v2763 = vand.u32 %v2696, 2147483648
  %v2764 = vor.u32 1.1754944e-38, %v2763
  %v2765 = vsel %vm2762, %v2764, %v2760
  %v2766 = vmul.f32 1.0, %v2765
  %v2767 = vrcp.pop %v2697
  %v2768 = vmul.f32 %v2697, %v2767
  %v2769 = vsub.f32 1.0, %v2768
  %v2770 = vmul.f32 %v2767, %v2769
  %v2771 = vadd.f32 %v2767, %v2770
  %vm2772 = vweird.f32 %v2697
  %vm2773 = vweird.f32 %v2767
  %vm2774 = vmor %vm2772, %vm2773
  %v2775 = vsel %vm2774, %v2767, %v2771
  %v2776 = vand.u32 2147483647, %v2697
  %vm2777 = vcmp.eq.f32.partialorder %v2776, 8.507059e+37
  %v2778 = vand.u32 %v2697, 2147483648
  %v2779 = vor.u32 1.1754944e-38, %v2778
  %v2780 = vsel %vm2777, %v2779, %v2775
  %v2781 = vmul.f32 1.0, %v2780
  %v2782 = vrcp.pop %v2698
  %v2783 = vmul.f32 %v2698, %v2782
  %v2784 = vsub.f32 1.0, %v2783
  %v2785 = vmul.f32 %v2782, %v2784
  %v2786 = vadd.f32 %v2782, %v2785
  %vm2787 = vweird.f32 %v2698
  %vm2788 = vweird.f32 %v2782
  %vm2789 = vmor %vm2787, %vm2788
  %v2790 = vsel %vm2789, %v2782, %v2786
  %v2791 = vand.u32 2147483647, %v2698
  %vm2792 = vcmp.eq.f32.partialorder %v2791, 8.507059e+37
  %v2793 = vand.u32 %v2698, 2147483648
  %v2794 = vor.u32 1.1754944e-38, %v2793
  %v2795 = vsel %vm2792, %v2794, %v2790
  %v2796 = vmul.f32 1.0, %v2795
  %v2797 = vrcp.pop %v2699
  %v2798 = vmul.f32 %v2699, %v2797
  %v2799 = vsub.f32 1.0, %v2798
  %v2800 = vmul.f32 %v2797, %v2799
  %v2801 = vadd.f32 %v2797, %v2800
  %vm2802 = vweird.f32 %v2699
  %vm2803 = vweird.f32 %v2797
  %vm2804 = vmor %vm2802, %vm2803
  %v2805 = vsel %vm2804, %v2797, %v2801
  %v2806 = vand.u32 2147483647, %v2699
  %vm2807 = vcmp.eq.f32.partialorder %v2806, 8.507059e+37
  %v2808 = vand.u32 %v2699, 2147483648
  %v2809 = vor.u32 1.1754944e-38, %v2808
  %v2810 = vsel %vm2807, %v2809, %v2805
  %v2811 = vmul.f32 1.0, %v2810
  %v2812 = vrcp.pop %v2700
  %v2813 = vmul.f32 %v2700, %v2812
  %v2814 = vsub.f32 1.0, %v2813
  %v2815 = vmul.f32 %v2812, %v2814
  %v2816 = vadd.f32 %v2812, %v2815
  %vm2817 = vweird.f32 %v2700
  %vm2818 = vweird.f32 %v2812
  %vm2819 = vmor %vm2817, %vm2818
  %v2820 = vsel %vm2819, %v2812, %v2816
  %v2821 = vand.u32 2147483647, %v2700
  %vm2822 = vcmp.eq.f32.partialorder %v2821, 8.507059e+37
  %v2823 = vand.u32 %v2700, 2147483648
  %v2824 = vor.u32 1.1754944e-38, %v2823
  %v2825 = vsel %vm2822, %v2824, %v2820
  %v2826 = vmul.f32 1.0, %v2825
  %v2827 = vrcp.pop %v2701
  %v2828 = vmul.f32 %v2701, %v2827
  %v2829 = vsub.f32 1.0, %v2828
  %v2830 = vmul.f32 %v2827, %v2829
  %v2831 = vadd.f32 %v2827, %v2830
  %vm2832 = vweird.f32 %v2701
  %vm2833 = vweird.f32 %v2827
  %vm2834 = vmor %vm2832, %vm2833
  %v2835 = vsel %vm2834, %v2827, %v2831
  %v2836 = vand.u32 2147483647, %v2701
  %vm2837 = vcmp.eq.f32.partialorder %v2836, 8.507059e+37
  %v2838 = vand.u32 %v2701, 2147483648
  %v2839 = vor.u32 1.1754944e-38, %v2838
  %v2840 = vsel %vm2837, %v2839, %v2835
  %v2841 = vmul.f32 1.0, %v2840
  %v2842 = vrcp.pop %v2702
  %v2843 = vmul.f32 %v2702, %v2842
  %v2844 = vsub.f32 1.0, %v2843
  %v2845 = vmul.f32 %v2842, %v2844
  %v2846 = vadd.f32 %v2842, %v2845
  %vm2847 = vweird.f32 %v2702
  %vm2848 = vweird.f32 %v2842
  %vm2849 = vmor %vm2847, %vm2848
  %v2850 = vsel %vm2849, %v2842, %v2846
  %v2851 = vand.u32 2147483647, %v2702
  %vm2852 = vcmp.eq.f32.partialorder %v2851, 8.507059e+37
  %v2853 = vand.u32 %v2702, 2147483648
  %v2854 = vor.u32 1.1754944e-38, %v2853
  %v2855 = vsel %vm2852, %v2854, %v2850
  %v2856 = vmul.f32 1.0, %v2855
  %v2857 = vrcp.pop %v2703
  %v2858 = vmul.f32 %v2703, %v2857
  %v2859 = vsub.f32 1.0, %v2858
  %v2860 = vmul.f32 %v2857, %v2859
  %v2861 = vadd.f32 %v2857, %v2860
  %vm2862 = vweird.f32 %v2703
  %vm2863 = vweird.f32 %v2857
  %vm2864 = vmor %vm2862, %vm2863
  %v2865 = vsel %vm2864, %v2857, %v2861
  %v2866 = vand.u32 2147483647, %v2703
  %vm2867 = vcmp.eq.f32.partialorder %v2866, 8.507059e+37
  %v2868 = vand.u32 %v2703, 2147483648
  %v2869 = vor.u32 1.1754944e-38, %v2868
  %v2870 = vsel %vm2867, %v2869, %v2865
  %v2871 = vmul.f32 1.0, %v2870
  %v2872 = vrcp.pop %v2704
  %v2873 = vmul.f32 %v2704, %v2872
  %v2874 = vsub.f32 1.0, %v2873
  %v2875 = vmul.f32 %v2872, %v2874
  %v2876 = vadd.f32 %v2872, %v2875
  %vm2877 = vweird.f32 %v2704
  %vm2878 = vweird.f32 %v2872
  %vm2879 = vmor %vm2877, %vm2878
  %v2880 = vsel %vm2879, %v2872, %v2876
  %v2881 = vand.u32 2147483647, %v2704
  %vm2882 = vcmp.eq.f32.partialorder %v2881, 8.507059e+37
  %v2883 = vand.u32 %v2704, 2147483648
  %v2884 = vor.u32 1.1754944e-38, %v2883
  %v2885 = vsel %vm2882, %v2884, %v2880
  %v2886 = vmul.f32 1.0, %v2885
  %v2887 = vrcp.pop %v2705
  %v2888 = vmul.f32 %v2705, %v2887
  %v2889 = vsub.f32 1.0, %v2888
  %v2890 = vmul.f32 %v2887, %v2889
  %v2891 = vadd.f32 %v2887, %v2890
  %vm2892 = vweird.f32 %v2705
  %vm2893 = vweird.f32 %v2887
  %vm2894 = vmor %vm2892, %vm2893
  %v2895 = vsel %vm2894, %v2887, %v2891
  %v2896 = vand.u32 2147483647, %v2705
  %vm2897 = vcmp.eq.f32.partialorder %v2896, 8.507059e+37
  %v2898 = vand.u32 %v2705, 2147483648
  %v2899 = vor.u32 1.1754944e-38, %v2898
  %v2900 = vsel %vm2897, %v2899, %v2895
  %v2901 = vmul.f32 1.0, %v2900
  %v2902 = vrcp.pop %v2706
  %v2903 = vmul.f32 %v2706, %v2902
  %v2904 = vsub.f32 1.0, %v2903
  %v2905 = vmul.f32 %v2902, %v2904
  %v2906 = vadd.f32 %v2902, %v2905
  %vm2907 = vweird.f32 %v2706
  %vm2908 = vweird.f32 %v2902
  %vm2909 = vmor %vm2907, %vm2908
  %v2910 = vsel %vm2909, %v2902, %v2906
  %v2911 = vand.u32 2147483647, %v2706
  %vm2912 = vcmp.eq.f32.partialorder %v2911, 8.507059e+37
  %v2913 = vand.u32 %v2706, 2147483648
  %v2914 = vor.u32 1.1754944e-38, %v2913
  %v2915 = vsel %vm2912, %v2914, %v2910
  %v2916 = vmul.f32 1.0, %v2915
  %2917 = vst [vmem:[%s17] sm:$0xff] %v2721
  %2918 = vst [vmem:[%s17 + $0x8] sm:$0xff] %v2736
  %2919 = vst [vmem:[%s17 + $0x10] sm:$0xff] %v2751
  %2920 = vst [vmem:[%s17 + $0x18] sm:$0xff] %v2766
  %2921 = vst [vmem:[%s17 + $0x20] sm:$0xff] %v2781
  %2922 = vst [vmem:[%s17 + $0x28] sm:$0xff] %v2796
  %2923 = vst [vmem:[%s17 + $0x30] sm:$0xff] %v2811
  %2924 = vst [vmem:[%s17 + $0x38] sm:$0xff] %v2826
  %2925 = vst [vmem:[%s17 + $0x40] sm:$0xff] %v2841
  %2926 = vst [vmem:[%s17 + $0x48] sm:$0xff] %v2856
  %2927 = vst [vmem:[%s17 + $0x50] sm:$0xff] %v2871
  %2928 = vst [vmem:[%s17 + $0x58] sm:$0xff] %v2886
  %2929 = vst [vmem:[%s17 + $0x60] sm:$0xff] %v2901
  %2930 = vst [vmem:[%s17 + $0x68] sm:$0xff] %v2916
  // Predicated region
  $region70: #{cvae_mlp_forward.1} parent=0 // pred_check
    _
  $region71: #{cvae_mlp_forward.1} parent=0 // pred_check_branch
    %2932 = sbr.rel (0) target = $region73
  $region72: #{cvae_mlp_forward.1} parent=0 // pred_region
    _
  $region73: #{cvae_mlp_forward.1} parent=0 // pred_fallthru
    _
  // Predicated region
  $region74: #{cvae_mlp_forward.1} parent=0 // pred_check
    _
  $region75: #{cvae_mlp_forward.1} parent=0 // pred_check_branch
    %2934 = sbr.rel (0) target = $region77
  $region76: #{cvae_mlp_forward.1} parent=0 // pred_region
    _
  $region77: #{cvae_mlp_forward.1} parent=0 // pred_fallthru
    _
  // Predicated region
  $region78: #{cvae_mlp_forward.1} parent=0 // pred_check
    _
  $region79: #{cvae_mlp_forward.1} parent=0 // pred_check_branch
    %2936 = sbr.rel (0) target = $region81
  $region80: #{cvae_mlp_forward.1} parent=0 // pred_region
    _
  $region81: #{cvae_mlp_forward.1} parent=0 // pred_fallthru
    _
  // Predicated region
  $region82: #{cvae_mlp_forward.1} parent=0 // pred_check
    _
  $region83: #{cvae_mlp_forward.1} parent=0 // pred_check_branch
    %2938 = sbr.rel (0) target = $region85
  $region84: #{cvae_mlp_forward.1} parent=0 // pred_region
    _
  $region85: #{cvae_mlp_forward.1} parent=0 // pred_fallthru
    _
  // Predicated region
  $region86: #{cvae_mlp_forward.1} parent=0 // pred_check
    _
  $region87: #{cvae_mlp_forward.1} parent=0 // pred_check_branch
    %2940 = sbr.rel (0) target = $region89
  $region88: #{cvae_mlp_forward.1} parent=0 // pred_region
    _
  $region89: #{cvae_mlp_forward.1} parent=0 // pred_fallthru
    _
  // Predicated region
  $region90: #{cvae_mlp_forward.1} parent=0 // pred_check
    _
  $region91: #{cvae_mlp_forward.1} parent=0 // pred_check_branch
    %2942 = sbr.rel (0) target = $region93
  $region92: #{cvae_mlp_forward.1} parent=0 // pred_region
    _
  $region93: #{cvae_mlp_forward.1} parent=0 // pred_fallthru
    _
  // Predicated region
  $region94: #{cvae_mlp_forward.1} parent=0 // pred_check
    _
  $region95: #{cvae_mlp_forward.1} parent=0 // pred_check_branch
    %2944 = sbr.rel (0) target = $region97
  $region96: #{cvae_mlp_forward.1} parent=0 // pred_region
    _
  $region97: #{cvae_mlp_forward.1} parent=0 // pred_fallthru
    _
  // Predicated region
  $region98: #{cvae_mlp_forward.1} parent=0 // pred_check
    _
  $region99: #{cvae_mlp_forward.1} parent=0 // pred_check_branch
    %2946 = sbr.rel (0) target = $region101
  $region100: #{cvae_mlp_forward.1} parent=0 // pred_region
    _
  $region101: #{cvae_mlp_forward.1} parent=0 // pred_fallthru
    _

</llo_original>
